<compile_context>
chip_gen: v5e
topology: v5e:2x2
jax: 0.10.0
libtpu: 0.0.40
codegen_flags: <defaults>
</compile_context>

<pallas_src>
import jax
import jax.numpy as jnp
from jax import lax
from jax.experimental import pallas as pl
from jax.experimental.pallas import tpu as pltpu

INPUT_SIZE = 1
HIDDEN_SIZE = 32   # small-shape stand-in for the module default 64 (4H = 128 lanes)
NUM_LAYERS = 2
OUT_LANES = 128    # lane-dense output width (column 0 is the real fc output)


def lstm_predictor_kernel(x_ref, wih0_ref, b0_ref, whh0_ref, w1_ref, b1_ref,
                          wfc_ref, bfc_ref, out_ref):
    # x_ref   : (S, TB, IP)  batch tile of the input, feature dim zero-padded to IP
    # wih0_ref: (IP, 4H)     layer-0 input weights (gate cols [i|f|o|g]; pad rows are zero)
    # b0_ref  : (1, 4H)      b_ih0 + b_hh0
    # whh0_ref: (H, 4H)      layer-0 recurrent weights
    # w1_ref  : (2H, 4H)     fused layer-1 weights [W_ih1; W_hh1]
    # b1_ref  : (1, 4H)      b_ih1 + b_hh1
    # wfc_ref : (H, 128)     fc weights padded to 128 lanes (col 0 real)
    # bfc_ref : (1, 128)
    # out_ref : (TB, 128)
    S, TB, IP = x_ref.shape
    fourH = whh0_ref.shape[1]
    H = fourH // 4

    whh0 = whh0_ref[...]
    w1 = w1_ref[...]
    # Hoist the layer-1 bias broadcast out of the recurrence (no CSE of broadcast_in_dim).
    b1 = jnp.broadcast_to(b1_ref[...], (TB, fourH))

    # Layer-0 input projection for ALL timesteps: one MXU push, off the serial path.
    x_all = x_ref[...].reshape(S * TB, IP)
    gx0 = (jnp.dot(x_all, wih0_ref[...], preferred_element_type=jnp.float32)
           + jnp.broadcast_to(b0_ref[...], (S * TB, fourH)))          # (S*TB, 4H)

    def gate_apply(gates, c):
        # gate columns are [i | f | o | g]: one sigmoid over 3H lanes, one tanh over H.
        sig = jax.nn.sigmoid(gates[:, 0:3 * H])
        i = sig[:, 0 * H:1 * H]
        f = sig[:, 1 * H:2 * H]
        o = sig[:, 2 * H:3 * H]
        g = jnp.tanh(gates[:, 3 * H:4 * H])
        c_new = f * c + i * g
        h_new = o * jnp.tanh(c_new)
        return h_new, c_new

    h0 = c0 = h1 = c1 = jnp.zeros((TB, H), jnp.float32)   # zero initial state, as in forward()

    # Static unroll: S is a trace-time constant; slices of gx0 are static & sublane-aligned.
    for t in range(S):
        # Layer 0: only the recurrent matmul remains on the serial path.
        gates0 = (gx0[t * TB:(t + 1) * TB, :]
                  + jnp.dot(h0, whh0, preferred_element_type=jnp.float32))
        h0, c0 = gate_apply(gates0, c0)
        # TODO(synk): inter-layer dropout(p=0.2) is train-only in nn.LSTM; omitted (eval).
        # Layer 1: fused [h0, h1] @ [W_ih1; W_hh1] -> single MXU push per step.
        hin = jnp.concatenate([h0, h1], axis=1)                        # (TB, 2H)
        gates1 = jnp.dot(hin, w1, preferred_element_type=jnp.float32) + b1
        h1, c1 = gate_apply(gates1, c1)

    # fc(out[:, -1, :]) as a lane-dense (TB, 128) store; column 0 is the real output.
    out_ref[...] = (jnp.dot(h1, wfc_ref[...], preferred_element_type=jnp.float32)
                    + bfc_ref[...])


def make_params(key, input_size=INPUT_SIZE, hidden=HIDDEN_SIZE):
    """Deterministic PyTorch-like uniform(-1/sqrt(H), 1/sqrt(H)) init."""
    k = 1.0 / jnp.sqrt(jnp.float32(hidden))
    keys = jax.random.split(key, 10)
    u = lambda kk, shape: jax.random.uniform(kk, shape, jnp.float32, -k, k)
    return {
        # layer 0
        "w_ih0": u(keys[0], (4 * hidden, input_size)),
        "w_hh0": u(keys[1], (4 * hidden, hidden)),
        "b_ih0": u(keys[2], (4 * hidden,)),
        "b_hh0": u(keys[3], (4 * hidden,)),
        # layer 1 (input is layer-0 hidden)
        "w_ih1": u(keys[4], (4 * hidden, hidden)),
        "w_hh1": u(keys[5], (4 * hidden, hidden)),
        "b_ih1": u(keys[6], (4 * hidden,)),
        "b_hh1": u(keys[7], (4 * hidden,)),
        # fc
        "w_fc": u(keys[8], (1, hidden)),
        "b_fc": u(keys[9], (1,)),
    }


def _reorder_rows(w):
    """(4H, X) with row blocks [i; f; g; o] -> row blocks [i; f; o; g]."""
    i, f, g, o = jnp.split(w, 4, axis=0)
    return jnp.concatenate([i, f, o, g], axis=0)


def _reorder_vec(b):
    i, f, g, o = jnp.split(b, 4)
    return jnp.concatenate([i, f, o, g])


def _round_up(n, m):
    return ((n + m - 1) // m) * m


def lstm_predictor_pallas(x, params):
    """x: (batch, seq, input_size) float32 -> (batch, 1) float32."""
    B, S, I = x.shape
    H = params["w_hh0"].shape[1]
    IP = _round_up(I, 8)                                   # sublane-aligned contraction dim
    # Batch tile: one sublane block minimum; grows (power of two, <=128) with batch so large
    # batches use few grid steps while B=2 still runs in a single step.
    TB = max(8, min(128, pl.next_power_of_2(B)))
    B_pad = _round_up(B, TB)

    x = x.astype(jnp.float32)
    x = jnp.pad(x, ((0, B_pad - B), (0, 0), (0, IP - I)))
    x_t = jnp.transpose(x, (1, 0, 2))                                  # (S, B_pad, IP)

    # ---- Layer 0 weights: gate-column permute, transpose, zero-pad contraction dim to IP.
    wih0 = (jnp.zeros((IP, 4 * H), jnp.float32)
            .at[:I].set(_reorder_rows(params["w_ih0"]).T))             # (IP, 4H)
    b0 = _reorder_vec(params["b_ih0"] + params["b_hh0"]).reshape(1, 4 * H)
    whh0 = _reorder_rows(params["w_hh0"]).T                            # (H, 4H)

    # ---- Layer 1: fused weights [W_ih1; W_hh1] and combined bias.
    w1 = jnp.concatenate([_reorder_rows(params["w_ih1"]).T,
                          _reorder_rows(params["w_hh1"]).T], axis=0)   # (2H, 4H)
    b1 = _reorder_vec(params["b_ih1"] + params["b_hh1"]).reshape(1, 4 * H)

    # ---- fc, padded to 128 output lanes so the kernel store is an unmasked lane-dense vst.
    wfc = jnp.zeros((H, OUT_LANES), jnp.float32).at[:, 0:1].set(params["w_fc"].T)
    bfc = jnp.zeros((1, OUT_LANES), jnp.float32).at[0, 0].set(params["b_fc"][0])

    full = lambda shape: pl.BlockSpec(shape, lambda b: (0,) * len(shape))
    out = pl.pallas_call(
        lstm_predictor_kernel,
        out_shape=jax.ShapeDtypeStruct((B_pad, OUT_LANES), jnp.float32),
        grid=(B_pad // TB,),                                           # parallel over batch tiles
        in_specs=[
            pl.BlockSpec((S, TB, IP), lambda b: (0, b, 0)),            # x (batch-tiled)
            full((IP, 4 * H)),                                         # wih0
            full((1, 4 * H)),                                          # b0
            full((H, 4 * H)),                                          # whh0
            full((2 * H, 4 * H)),                                      # w1
            full((1, 4 * H)),                                          # b1
            full((H, OUT_LANES)),                                      # wfc (padded)
            full((1, OUT_LANES)),                                      # bfc (padded)
        ],
        out_specs=pl.BlockSpec((TB, OUT_LANES), lambda b: (b, 0)),
        compiler_params=pltpu.CompilerParams(
            dimension_semantics=("parallel",)),                        # megacore / v7x batch split
    )(x_t, wih0, b0, whh0, w1, b1, wfc, bfc)

    return out[:B, 0:1]


def lstm_predictor_ref(x, params):
    """Pure-JAX reference of the PyTorch forward (eval mode)."""
    B, S, I = x.shape
    H = params["w_hh0"].shape[1]

    def cell(xt, h, c, w_ih, w_hh, b_ih, b_hh):
        gates = xt @ w_ih.T + h @ w_hh.T + b_ih + b_hh
        i, f, g, o = jnp.split(gates, 4, axis=-1)
        c_new = jax.nn.sigmoid(f) * c + jax.nn.sigmoid(i) * jnp.tanh(g)
        h_new = jax.nn.sigmoid(o) * jnp.tanh(c_new)
        return h_new, c_new

    def step(carry, xt):
        h0, c0, h1, c1 = carry
        h0, c0 = cell(xt, h0, c0, params["w_ih0"], params["w_hh0"],
                      params["b_ih0"], params["b_hh0"])
        h1, c1 = cell(h0, h1, c1, params["w_ih1"], params["w_hh1"],
                      params["b_ih1"], params["b_hh1"])
        return (h0, c0, h1, c1), None

    zeros = jnp.zeros((B, H), jnp.float32)
    (_, _, h1, _), _ = lax.scan(step, (zeros, zeros, zeros, zeros),
                                jnp.transpose(x, (1, 0, 2)))
    return h1 @ params["w_fc"].T + params["b_fc"]


if __name__ == "__main__":
    key = jax.random.PRNGKey(0)
    k_x, k_p = jax.random.split(key)

    batch, seq = 2, 8
    x = jax.random.normal(k_x, (batch, seq, INPUT_SIZE), jnp.float32)
    params = make_params(k_p)

    out = lstm_predictor_pallas(x, params)
    out = jax.block_until_ready(out)

    ref = lstm_predictor_ref(x, params)
    assert out.shape == (batch, 1)
    assert jnp.allclose(out, ref, atol=1e-4, rtol=1e-4), (out, ref)

    print("KERNEL_OK")
</pallas_src>

<mosaic_0001>
module attributes {stable_mosaic.version = 11 : i64} {
  func.func @lstm_predictor_kernel(%arg0: i32, %arg1: memref<8x8x8xf32, #tpu.memory_space<vmem>>, %arg2: memref<8x128xf32, #tpu.memory_space<vmem>>, %arg3: memref<1x128xf32, #tpu.memory_space<vmem>>, %arg4: memref<32x128xf32, #tpu.memory_space<vmem>>, %arg5: memref<64x128xf32, #tpu.memory_space<vmem>>, %arg6: memref<1x128xf32, #tpu.memory_space<vmem>>, %arg7: memref<32x128xf32, #tpu.memory_space<vmem>>, %arg8: memref<1x128xf32, #tpu.memory_space<vmem>>, %arg9: memref<8x128xf32, #tpu.memory_space<vmem>>) attributes {dimension_semantics = [#tpu.dimension_semantics<parallel>], iteration_bounds = array<i64: 1>, scalar_prefetch = 0 : i64, scratch_operands = 0 : i64, tpu.core_type = #tpu.core_type<tc>, window_params = [{transform_indices = @transform_0, window_bounds = array<i64: 8, 8, 8>}, {pipeline_mode = #tpu.pipeline_mode<synchronous>, transform_indices = @transform_1, window_bounds = array<i64: 8, 128>}, {pipeline_mode = #tpu.pipeline_mode<synchronous>, transform_indices = @transform_2, window_bounds = array<i64: 1, 128>}, {pipeline_mode = #tpu.pipeline_mode<synchronous>, transform_indices = @transform_3, window_bounds = array<i64: 32, 128>}, {pipeline_mode = #tpu.pipeline_mode<synchronous>, transform_indices = @transform_4, window_bounds = array<i64: 64, 128>}, {pipeline_mode = #tpu.pipeline_mode<synchronous>, transform_indices = @transform_5, window_bounds = array<i64: 1, 128>}, {pipeline_mode = #tpu.pipeline_mode<synchronous>, transform_indices = @transform_6, window_bounds = array<i64: 32, 128>}, {pipeline_mode = #tpu.pipeline_mode<synchronous>, transform_indices = @transform_7, window_bounds = array<i64: 1, 128>}, {transform_indices = @transform_8, window_bounds = array<i64: 8, 128>}]} {
    %c0 = arith.constant 0 : index
    %c0_0 = arith.constant 0 : index
    %0 = vector.load %arg4[%c0, %c0_0] : memref<32x128xf32, #tpu.memory_space<vmem>>, vector<32x128xf32>
    %c0_1 = arith.constant 0 : index
    %c0_2 = arith.constant 0 : index
    %1 = vector.load %arg5[%c0_1, %c0_2] : memref<64x128xf32, #tpu.memory_space<vmem>>, vector<64x128xf32>
    %c0_3 = arith.constant 0 : index
    %c0_4 = arith.constant 0 : index
    %2 = vector.load %arg6[%c0_3, %c0_4] : memref<1x128xf32, #tpu.memory_space<vmem>>, vector<1x128xf32>
    %3 = vector.shape_cast %2 : vector<1x128xf32> to vector<1x128xf32>
    %4 = vector.broadcast %3 : vector<1x128xf32> to vector<8x128xf32>
    %c0_5 = arith.constant 0 : index
    %c0_6 = arith.constant 0 : index
    %c0_7 = arith.constant 0 : index
    %5 = vector.load %arg1[%c0_5, %c0_6, %c0_7] : memref<8x8x8xf32, #tpu.memory_space<vmem>>, vector<8x8x8xf32>
    %6 = vector.shape_cast %5 : vector<8x8x8xf32> to vector<64x8xf32>
    %c0_8 = arith.constant 0 : index
    %c0_9 = arith.constant 0 : index
    %7 = vector.load %arg2[%c0_8, %c0_9] : memref<8x128xf32, #tpu.memory_space<vmem>>, vector<8x128xf32>
    %cst = arith.constant dense<0.000000e+00> : vector<64x128xf32>
    %8 = tpu.matmul %6, %7, %cst {dimension_numbers = #tpu.dot_dimension_numbers<[1], [0], [0], [1], [0, 0, 1, 1], [], []>} : vector<64x8xf32>, vector<8x128xf32>, vector<64x128xf32> -> vector<64x128xf32>
    %c0_10 = arith.constant 0 : index
    %c0_11 = arith.constant 0 : index
    %9 = vector.load %arg3[%c0_10, %c0_11] : memref<1x128xf32, #tpu.memory_space<vmem>>, vector<1x128xf32>
    %10 = vector.shape_cast %9 : vector<1x128xf32> to vector<1x128xf32>
    %11 = vector.broadcast %10 : vector<1x128xf32> to vector<64x128xf32>
    %12 = arith.addf %8, %11 : vector<64x128xf32>
    %cst_12 = arith.constant 0.000000e+00 : f32
    %13 = vector.broadcast %cst_12 : f32 to vector<8x32xf32>
    %14 = vector.extract_strided_slice %12 {offsets = [0, 0], sizes = [8, 128], strides = [1, 1]} : vector<64x128xf32> to vector<8x128xf32>
    %cst_13 = arith.constant dense<0.000000e+00> : vector<8x128xf32>
    %15 = tpu.matmul %13, %0, %cst_13 {dimension_numbers = #tpu.dot_dimension_numbers<[1], [0], [0], [1], [0, 0, 1, 1], [], []>} : vector<8x32xf32>, vector<32x128xf32>, vector<8x128xf32> -> vector<8x128xf32>
    %16 = arith.addf %14, %15 : vector<8x128xf32>
    %17 = vector.extract_strided_slice %16 {offsets = [0, 0], sizes = [8, 96], strides = [1, 1]} : vector<8x128xf32> to vector<8x96xf32>
    %18 = arith.negf %17 : vector<8x96xf32>
    %19 = math.exp %18 : vector<8x96xf32>
    %cst_14 = arith.constant 1.000000e+00 : f32
    %20 = vector.broadcast %cst_14 : f32 to vector<8x96xf32>
    %21 = arith.addf %20, %19 : vector<8x96xf32>
    %22 = arith.divf %20, %21 : vector<8x96xf32>
    %23 = vector.extract_strided_slice %22 {offsets = [0, 0], sizes = [8, 32], strides = [1, 1]} : vector<8x96xf32> to vector<8x32xf32>
    %24 = vector.extract_strided_slice %22 {offsets = [0, 32], sizes = [8, 32], strides = [1, 1]} : vector<8x96xf32> to vector<8x32xf32>
    %25 = vector.extract_strided_slice %22 {offsets = [0, 64], sizes = [8, 32], strides = [1, 1]} : vector<8x96xf32> to vector<8x32xf32>
    %26 = vector.extract_strided_slice %16 {offsets = [0, 96], sizes = [8, 32], strides = [1, 1]} : vector<8x128xf32> to vector<8x32xf32>
    %27 = math.tanh %26 : vector<8x32xf32>
    %28 = arith.mulf %24, %13 : vector<8x32xf32>
    %29 = arith.mulf %23, %27 : vector<8x32xf32>
    %30 = arith.addf %28, %29 : vector<8x32xf32>
    %31 = math.tanh %30 : vector<8x32xf32>
    %32 = arith.mulf %25, %31 : vector<8x32xf32>
    %33 = tpu.concatenate %32, %13 in 1 : vector<8x32xf32>, vector<8x32xf32> -> vector<8x64xf32>
    %cst_15 = arith.constant dense<0.000000e+00> : vector<8x128xf32>
    %34 = tpu.matmul %33, %1, %cst_15 {dimension_numbers = #tpu.dot_dimension_numbers<[1], [0], [0], [1], [0, 0, 1, 1], [], []>} : vector<8x64xf32>, vector<64x128xf32>, vector<8x128xf32> -> vector<8x128xf32>
    %35 = arith.addf %34, %4 : vector<8x128xf32>
    %36 = vector.extract_strided_slice %35 {offsets = [0, 0], sizes = [8, 96], strides = [1, 1]} : vector<8x128xf32> to vector<8x96xf32>
    %37 = arith.negf %36 : vector<8x96xf32>
    %38 = math.exp %37 : vector<8x96xf32>
    %cst_16 = arith.constant 1.000000e+00 : f32
    %39 = vector.broadcast %cst_16 : f32 to vector<8x96xf32>
    %40 = arith.addf %39, %38 : vector<8x96xf32>
    %41 = arith.divf %39, %40 : vector<8x96xf32>
    %42 = vector.extract_strided_slice %41 {offsets = [0, 0], sizes = [8, 32], strides = [1, 1]} : vector<8x96xf32> to vector<8x32xf32>
    %43 = vector.extract_strided_slice %41 {offsets = [0, 32], sizes = [8, 32], strides = [1, 1]} : vector<8x96xf32> to vector<8x32xf32>
    %44 = vector.extract_strided_slice %41 {offsets = [0, 64], sizes = [8, 32], strides = [1, 1]} : vector<8x96xf32> to vector<8x32xf32>
    %45 = vector.extract_strided_slice %35 {offsets = [0, 96], sizes = [8, 32], strides = [1, 1]} : vector<8x128xf32> to vector<8x32xf32>
    %46 = math.tanh %45 : vector<8x32xf32>
    %47 = arith.mulf %43, %13 : vector<8x32xf32>
    %48 = arith.mulf %42, %46 : vector<8x32xf32>
    %49 = arith.addf %47, %48 : vector<8x32xf32>
    %50 = math.tanh %49 : vector<8x32xf32>
    %51 = arith.mulf %44, %50 : vector<8x32xf32>
    %52 = vector.extract_strided_slice %12 {offsets = [8, 0], sizes = [8, 128], strides = [1, 1]} : vector<64x128xf32> to vector<8x128xf32>
    %cst_17 = arith.constant dense<0.000000e+00> : vector<8x128xf32>
    %53 = tpu.matmul %32, %0, %cst_17 {dimension_numbers = #tpu.dot_dimension_numbers<[1], [0], [0], [1], [0, 0, 1, 1], [], []>} : vector<8x32xf32>, vector<32x128xf32>, vector<8x128xf32> -> vector<8x128xf32>
    %54 = arith.addf %52, %53 : vector<8x128xf32>
    %55 = vector.extract_strided_slice %54 {offsets = [0, 0], sizes = [8, 96], strides = [1, 1]} : vector<8x128xf32> to vector<8x96xf32>
    %56 = arith.negf %55 : vector<8x96xf32>
    %57 = math.exp %56 : vector<8x96xf32>
    %cst_18 = arith.constant 1.000000e+00 : f32
    %58 = vector.broadcast %cst_18 : f32 to vector<8x96xf32>
    %59 = arith.addf %58, %57 : vector<8x96xf32>
    %60 = arith.divf %58, %59 : vector<8x96xf32>
    %61 = vector.extract_strided_slice %60 {offsets = [0, 0], sizes = [8, 32], strides = [1, 1]} : vector<8x96xf32> to vector<8x32xf32>
    %62 = vector.extract_strided_slice %60 {offsets = [0, 32], sizes = [8, 32], strides = [1, 1]} : vector<8x96xf32> to vector<8x32xf32>
    %63 = vector.extract_strided_slice %60 {offsets = [0, 64], sizes = [8, 32], strides = [1, 1]} : vector<8x96xf32> to vector<8x32xf32>
    %64 = vector.extract_strided_slice %54 {offsets = [0, 96], sizes = [8, 32], strides = [1, 1]} : vector<8x128xf32> to vector<8x32xf32>
    %65 = math.tanh %64 : vector<8x32xf32>
    %66 = arith.mulf %62, %30 : vector<8x32xf32>
    %67 = arith.mulf %61, %65 : vector<8x32xf32>
    %68 = arith.addf %66, %67 : vector<8x32xf32>
    %69 = math.tanh %68 : vector<8x32xf32>
    %70 = arith.mulf %63, %69 : vector<8x32xf32>
    %71 = tpu.concatenate %70, %51 in 1 : vector<8x32xf32>, vector<8x32xf32> -> vector<8x64xf32>
    %cst_19 = arith.constant dense<0.000000e+00> : vector<8x128xf32>
    %72 = tpu.matmul %71, %1, %cst_19 {dimension_numbers = #tpu.dot_dimension_numbers<[1], [0], [0], [1], [0, 0, 1, 1], [], []>} : vector<8x64xf32>, vector<64x128xf32>, vector<8x128xf32> -> vector<8x128xf32>
    %73 = arith.addf %72, %4 : vector<8x128xf32>
    %74 = vector.extract_strided_slice %73 {offsets = [0, 0], sizes = [8, 96], strides = [1, 1]} : vector<8x128xf32> to vector<8x96xf32>
    %75 = arith.negf %74 : vector<8x96xf32>
    %76 = math.exp %75 : vector<8x96xf32>
    %cst_20 = arith.constant 1.000000e+00 : f32
    %77 = vector.broadcast %cst_20 : f32 to vector<8x96xf32>
    %78 = arith.addf %77, %76 : vector<8x96xf32>
    %79 = arith.divf %77, %78 : vector<8x96xf32>
    %80 = vector.extract_strided_slice %79 {offsets = [0, 0], sizes = [8, 32], strides = [1, 1]} : vector<8x96xf32> to vector<8x32xf32>
    %81 = vector.extract_strided_slice %79 {offsets = [0, 32], sizes = [8, 32], strides = [1, 1]} : vector<8x96xf32> to vector<8x32xf32>
    %82 = vector.extract_strided_slice %79 {offsets = [0, 64], sizes = [8, 32], strides = [1, 1]} : vector<8x96xf32> to vector<8x32xf32>
    %83 = vector.extract_strided_slice %73 {offsets = [0, 96], sizes = [8, 32], strides = [1, 1]} : vector<8x128xf32> to vector<8x32xf32>
    %84 = math.tanh %83 : vector<8x32xf32>
    %85 = arith.mulf %81, %49 : vector<8x32xf32>
    %86 = arith.mulf %80, %84 : vector<8x32xf32>
    %87 = arith.addf %85, %86 : vector<8x32xf32>
    %88 = math.tanh %87 : vector<8x32xf32>
    %89 = arith.mulf %82, %88 : vector<8x32xf32>
    %90 = vector.extract_strided_slice %12 {offsets = [16, 0], sizes = [8, 128], strides = [1, 1]} : vector<64x128xf32> to vector<8x128xf32>
    %cst_21 = arith.constant dense<0.000000e+00> : vector<8x128xf32>
    %91 = tpu.matmul %70, %0, %cst_21 {dimension_numbers = #tpu.dot_dimension_numbers<[1], [0], [0], [1], [0, 0, 1, 1], [], []>} : vector<8x32xf32>, vector<32x128xf32>, vector<8x128xf32> -> vector<8x128xf32>
    %92 = arith.addf %90, %91 : vector<8x128xf32>
    %93 = vector.extract_strided_slice %92 {offsets = [0, 0], sizes = [8, 96], strides = [1, 1]} : vector<8x128xf32> to vector<8x96xf32>
    %94 = arith.negf %93 : vector<8x96xf32>
    %95 = math.exp %94 : vector<8x96xf32>
    %cst_22 = arith.constant 1.000000e+00 : f32
    %96 = vector.broadcast %cst_22 : f32 to vector<8x96xf32>
    %97 = arith.addf %96, %95 : vector<8x96xf32>
    %98 = arith.divf %96, %97 : vector<8x96xf32>
    %99 = vector.extract_strided_slice %98 {offsets = [0, 0], sizes = [8, 32], strides = [1, 1]} : vector<8x96xf32> to vector<8x32xf32>
    %100 = vector.extract_strided_slice %98 {offsets = [0, 32], sizes = [8, 32], strides = [1, 1]} : vector<8x96xf32> to vector<8x32xf32>
    %101 = vector.extract_strided_slice %98 {offsets = [0, 64], sizes = [8, 32], strides = [1, 1]} : vector<8x96xf32> to vector<8x32xf32>
    %102 = vector.extract_strided_slice %92 {offsets = [0, 96], sizes = [8, 32], strides = [1, 1]} : vector<8x128xf32> to vector<8x32xf32>
    %103 = math.tanh %102 : vector<8x32xf32>
    %104 = arith.mulf %100, %68 : vector<8x32xf32>
    %105 = arith.mulf %99, %103 : vector<8x32xf32>
    %106 = arith.addf %104, %105 : vector<8x32xf32>
    %107 = math.tanh %106 : vector<8x32xf32>
    %108 = arith.mulf %101, %107 : vector<8x32xf32>
    %109 = tpu.concatenate %108, %89 in 1 : vector<8x32xf32>, vector<8x32xf32> -> vector<8x64xf32>
    %cst_23 = arith.constant dense<0.000000e+00> : vector<8x128xf32>
    %110 = tpu.matmul %109, %1, %cst_23 {dimension_numbers = #tpu.dot_dimension_numbers<[1], [0], [0], [1], [0, 0, 1, 1], [], []>} : vector<8x64xf32>, vector<64x128xf32>, vector<8x128xf32> -> vector<8x128xf32>
    %111 = arith.addf %110, %4 : vector<8x128xf32>
    %112 = vector.extract_strided_slice %111 {offsets = [0, 0], sizes = [8, 96], strides = [1, 1]} : vector<8x128xf32> to vector<8x96xf32>
    %113 = arith.negf %112 : vector<8x96xf32>
    %114 = math.exp %113 : vector<8x96xf32>
    %cst_24 = arith.constant 1.000000e+00 : f32
    %115 = vector.broadcast %cst_24 : f32 to vector<8x96xf32>
    %116 = arith.addf %115, %114 : vector<8x96xf32>
    %117 = arith.divf %115, %116 : vector<8x96xf32>
    %118 = vector.extract_strided_slice %117 {offsets = [0, 0], sizes = [8, 32], strides = [1, 1]} : vector<8x96xf32> to vector<8x32xf32>
    %119 = vector.extract_strided_slice %117 {offsets = [0, 32], sizes = [8, 32], strides = [1, 1]} : vector<8x96xf32> to vector<8x32xf32>
    %120 = vector.extract_strided_slice %117 {offsets = [0, 64], sizes = [8, 32], strides = [1, 1]} : vector<8x96xf32> to vector<8x32xf32>
    %121 = vector.extract_strided_slice %111 {offsets = [0, 96], sizes = [8, 32], strides = [1, 1]} : vector<8x128xf32> to vector<8x32xf32>
    %122 = math.tanh %121 : vector<8x32xf32>
    %123 = arith.mulf %119, %87 : vector<8x32xf32>
    %124 = arith.mulf %118, %122 : vector<8x32xf32>
    %125 = arith.addf %123, %124 : vector<8x32xf32>
    %126 = math.tanh %125 : vector<8x32xf32>
    %127 = arith.mulf %120, %126 : vector<8x32xf32>
    %128 = vector.extract_strided_slice %12 {offsets = [24, 0], sizes = [8, 128], strides = [1, 1]} : vector<64x128xf32> to vector<8x128xf32>
    %cst_25 = arith.constant dense<0.000000e+00> : vector<8x128xf32>
    %129 = tpu.matmul %108, %0, %cst_25 {dimension_numbers = #tpu.dot_dimension_numbers<[1], [0], [0], [1], [0, 0, 1, 1], [], []>} : vector<8x32xf32>, vector<32x128xf32>, vector<8x128xf32> -> vector<8x128xf32>
    %130 = arith.addf %128, %129 : vector<8x128xf32>
    %131 = vector.extract_strided_slice %130 {offsets = [0, 0], sizes = [8, 96], strides = [1, 1]} : vector<8x128xf32> to vector<8x96xf32>
    %132 = arith.negf %131 : vector<8x96xf32>
    %133 = math.exp %132 : vector<8x96xf32>
    %cst_26 = arith.constant 1.000000e+00 : f32
    %134 = vector.broadcast %cst_26 : f32 to vector<8x96xf32>
    %135 = arith.addf %134, %133 : vector<8x96xf32>
    %136 = arith.divf %134, %135 : vector<8x96xf32>
    %137 = vector.extract_strided_slice %136 {offsets = [0, 0], sizes = [8, 32], strides = [1, 1]} : vector<8x96xf32> to vector<8x32xf32>
    %138 = vector.extract_strided_slice %136 {offsets = [0, 32], sizes = [8, 32], strides = [1, 1]} : vector<8x96xf32> to vector<8x32xf32>
    %139 = vector.extract_strided_slice %136 {offsets = [0, 64], sizes = [8, 32], strides = [1, 1]} : vector<8x96xf32> to vector<8x32xf32>
    %140 = vector.extract_strided_slice %130 {offsets = [0, 96], sizes = [8, 32], strides = [1, 1]} : vector<8x128xf32> to vector<8x32xf32>
    %141 = math.tanh %140 : vector<8x32xf32>
    %142 = arith.mulf %138, %106 : vector<8x32xf32>
    %143 = arith.mulf %137, %141 : vector<8x32xf32>
    %144 = arith.addf %142, %143 : vector<8x32xf32>
    %145 = math.tanh %144 : vector<8x32xf32>
    %146 = arith.mulf %139, %145 : vector<8x32xf32>
    %147 = tpu.concatenate %146, %127 in 1 : vector<8x32xf32>, vector<8x32xf32> -> vector<8x64xf32>
    %cst_27 = arith.constant dense<0.000000e+00> : vector<8x128xf32>
    %148 = tpu.matmul %147, %1, %cst_27 {dimension_numbers = #tpu.dot_dimension_numbers<[1], [0], [0], [1], [0, 0, 1, 1], [], []>} : vector<8x64xf32>, vector<64x128xf32>, vector<8x128xf32> -> vector<8x128xf32>
    %149 = arith.addf %148, %4 : vector<8x128xf32>
    %150 = vector.extract_strided_slice %149 {offsets = [0, 0], sizes = [8, 96], strides = [1, 1]} : vector<8x128xf32> to vector<8x96xf32>
    %151 = arith.negf %150 : vector<8x96xf32>
    %152 = math.exp %151 : vector<8x96xf32>
    %cst_28 = arith.constant 1.000000e+00 : f32
    %153 = vector.broadcast %cst_28 : f32 to vector<8x96xf32>
    %154 = arith.addf %153, %152 : vector<8x96xf32>
    %155 = arith.divf %153, %154 : vector<8x96xf32>
    %156 = vector.extract_strided_slice %155 {offsets = [0, 0], sizes = [8, 32], strides = [1, 1]} : vector<8x96xf32> to vector<8x32xf32>
    %157 = vector.extract_strided_slice %155 {offsets = [0, 32], sizes = [8, 32], strides = [1, 1]} : vector<8x96xf32> to vector<8x32xf32>
    %158 = vector.extract_strided_slice %155 {offsets = [0, 64], sizes = [8, 32], strides = [1, 1]} : vector<8x96xf32> to vector<8x32xf32>
    %159 = vector.extract_strided_slice %149 {offsets = [0, 96], sizes = [8, 32], strides = [1, 1]} : vector<8x128xf32> to vector<8x32xf32>
    %160 = math.tanh %159 : vector<8x32xf32>
    %161 = arith.mulf %157, %125 : vector<8x32xf32>
    %162 = arith.mulf %156, %160 : vector<8x32xf32>
    %163 = arith.addf %161, %162 : vector<8x32xf32>
    %164 = math.tanh %163 : vector<8x32xf32>
    %165 = arith.mulf %158, %164 : vector<8x32xf32>
    %166 = vector.extract_strided_slice %12 {offsets = [32, 0], sizes = [8, 128], strides = [1, 1]} : vector<64x128xf32> to vector<8x128xf32>
    %cst_29 = arith.constant dense<0.000000e+00> : vector<8x128xf32>
    %167 = tpu.matmul %146, %0, %cst_29 {dimension_numbers = #tpu.dot_dimension_numbers<[1], [0], [0], [1], [0, 0, 1, 1], [], []>} : vector<8x32xf32>, vector<32x128xf32>, vector<8x128xf32> -> vector<8x128xf32>
    %168 = arith.addf %166, %167 : vector<8x128xf32>
    %169 = vector.extract_strided_slice %168 {offsets = [0, 0], sizes = [8, 96], strides = [1, 1]} : vector<8x128xf32> to vector<8x96xf32>
    %170 = arith.negf %169 : vector<8x96xf32>
    %171 = math.exp %170 : vector<8x96xf32>
    %cst_30 = arith.constant 1.000000e+00 : f32
    %172 = vector.broadcast %cst_30 : f32 to vector<8x96xf32>
    %173 = arith.addf %172, %171 : vector<8x96xf32>
    %174 = arith.divf %172, %173 : vector<8x96xf32>
    %175 = vector.extract_strided_slice %174 {offsets = [0, 0], sizes = [8, 32], strides = [1, 1]} : vector<8x96xf32> to vector<8x32xf32>
    %176 = vector.extract_strided_slice %174 {offsets = [0, 32], sizes = [8, 32], strides = [1, 1]} : vector<8x96xf32> to vector<8x32xf32>
    %177 = vector.extract_strided_slice %174 {offsets = [0, 64], sizes = [8, 32], strides = [1, 1]} : vector<8x96xf32> to vector<8x32xf32>
    %178 = vector.extract_strided_slice %168 {offsets = [0, 96], sizes = [8, 32], strides = [1, 1]} : vector<8x128xf32> to vector<8x32xf32>
    %179 = math.tanh %178 : vector<8x32xf32>
    %180 = arith.mulf %176, %144 : vector<8x32xf32>
    %181 = arith.mulf %175, %179 : vector<8x32xf32>
    %182 = arith.addf %180, %181 : vector<8x32xf32>
    %183 = math.tanh %182 : vector<8x32xf32>
    %184 = arith.mulf %177, %183 : vector<8x32xf32>
    %185 = tpu.concatenate %184, %165 in 1 : vector<8x32xf32>, vector<8x32xf32> -> vector<8x64xf32>
    %cst_31 = arith.constant dense<0.000000e+00> : vector<8x128xf32>
    %186 = tpu.matmul %185, %1, %cst_31 {dimension_numbers = #tpu.dot_dimension_numbers<[1], [0], [0], [1], [0, 0, 1, 1], [], []>} : vector<8x64xf32>, vector<64x128xf32>, vector<8x128xf32> -> vector<8x128xf32>
    %187 = arith.addf %186, %4 : vector<8x128xf32>
    %188 = vector.extract_strided_slice %187 {offsets = [0, 0], sizes = [8, 96], strides = [1, 1]} : vector<8x128xf32> to vector<8x96xf32>
    %189 = arith.negf %188 : vector<8x96xf32>
    %190 = math.exp %189 : vector<8x96xf32>
    %cst_32 = arith.constant 1.000000e+00 : f32
    %191 = vector.broadcast %cst_32 : f32 to vector<8x96xf32>
    %192 = arith.addf %191, %190 : vector<8x96xf32>
    %193 = arith.divf %191, %192 : vector<8x96xf32>
    %194 = vector.extract_strided_slice %193 {offsets = [0, 0], sizes = [8, 32], strides = [1, 1]} : vector<8x96xf32> to vector<8x32xf32>
    %195 = vector.extract_strided_slice %193 {offsets = [0, 32], sizes = [8, 32], strides = [1, 1]} : vector<8x96xf32> to vector<8x32xf32>
    %196 = vector.extract_strided_slice %193 {offsets = [0, 64], sizes = [8, 32], strides = [1, 1]} : vector<8x96xf32> to vector<8x32xf32>
    %197 = vector.extract_strided_slice %187 {offsets = [0, 96], sizes = [8, 32], strides = [1, 1]} : vector<8x128xf32> to vector<8x32xf32>
    %198 = math.tanh %197 : vector<8x32xf32>
    %199 = arith.mulf %195, %163 : vector<8x32xf32>
    %200 = arith.mulf %194, %198 : vector<8x32xf32>
    %201 = arith.addf %199, %200 : vector<8x32xf32>
    %202 = math.tanh %201 : vector<8x32xf32>
    %203 = arith.mulf %196, %202 : vector<8x32xf32>
    %204 = vector.extract_strided_slice %12 {offsets = [40, 0], sizes = [8, 128], strides = [1, 1]} : vector<64x128xf32> to vector<8x128xf32>
    %cst_33 = arith.constant dense<0.000000e+00> : vector<8x128xf32>
    %205 = tpu.matmul %184, %0, %cst_33 {dimension_numbers = #tpu.dot_dimension_numbers<[1], [0], [0], [1], [0, 0, 1, 1], [], []>} : vector<8x32xf32>, vector<32x128xf32>, vector<8x128xf32> -> vector<8x128xf32>
    %206 = arith.addf %204, %205 : vector<8x128xf32>
    %207 = vector.extract_strided_slice %206 {offsets = [0, 0], sizes = [8, 96], strides = [1, 1]} : vector<8x128xf32> to vector<8x96xf32>
    %208 = arith.negf %207 : vector<8x96xf32>
    %209 = math.exp %208 : vector<8x96xf32>
    %cst_34 = arith.constant 1.000000e+00 : f32
    %210 = vector.broadcast %cst_34 : f32 to vector<8x96xf32>
    %211 = arith.addf %210, %209 : vector<8x96xf32>
    %212 = arith.divf %210, %211 : vector<8x96xf32>
    %213 = vector.extract_strided_slice %212 {offsets = [0, 0], sizes = [8, 32], strides = [1, 1]} : vector<8x96xf32> to vector<8x32xf32>
    %214 = vector.extract_strided_slice %212 {offsets = [0, 32], sizes = [8, 32], strides = [1, 1]} : vector<8x96xf32> to vector<8x32xf32>
    %215 = vector.extract_strided_slice %212 {offsets = [0, 64], sizes = [8, 32], strides = [1, 1]} : vector<8x96xf32> to vector<8x32xf32>
    %216 = vector.extract_strided_slice %206 {offsets = [0, 96], sizes = [8, 32], strides = [1, 1]} : vector<8x128xf32> to vector<8x32xf32>
    %217 = math.tanh %216 : vector<8x32xf32>
    %218 = arith.mulf %214, %182 : vector<8x32xf32>
    %219 = arith.mulf %213, %217 : vector<8x32xf32>
    %220 = arith.addf %218, %219 : vector<8x32xf32>
    %221 = math.tanh %220 : vector<8x32xf32>
    %222 = arith.mulf %215, %221 : vector<8x32xf32>
    %223 = tpu.concatenate %222, %203 in 1 : vector<8x32xf32>, vector<8x32xf32> -> vector<8x64xf32>
    %cst_35 = arith.constant dense<0.000000e+00> : vector<8x128xf32>
    %224 = tpu.matmul %223, %1, %cst_35 {dimension_numbers = #tpu.dot_dimension_numbers<[1], [0], [0], [1], [0, 0, 1, 1], [], []>} : vector<8x64xf32>, vector<64x128xf32>, vector<8x128xf32> -> vector<8x128xf32>
    %225 = arith.addf %224, %4 : vector<8x128xf32>
    %226 = vector.extract_strided_slice %225 {offsets = [0, 0], sizes = [8, 96], strides = [1, 1]} : vector<8x128xf32> to vector<8x96xf32>
    %227 = arith.negf %226 : vector<8x96xf32>
    %228 = math.exp %227 : vector<8x96xf32>
    %cst_36 = arith.constant 1.000000e+00 : f32
    %229 = vector.broadcast %cst_36 : f32 to vector<8x96xf32>
    %230 = arith.addf %229, %228 : vector<8x96xf32>
    %231 = arith.divf %229, %230 : vector<8x96xf32>
    %232 = vector.extract_strided_slice %231 {offsets = [0, 0], sizes = [8, 32], strides = [1, 1]} : vector<8x96xf32> to vector<8x32xf32>
    %233 = vector.extract_strided_slice %231 {offsets = [0, 32], sizes = [8, 32], strides = [1, 1]} : vector<8x96xf32> to vector<8x32xf32>
    %234 = vector.extract_strided_slice %231 {offsets = [0, 64], sizes = [8, 32], strides = [1, 1]} : vector<8x96xf32> to vector<8x32xf32>
    %235 = vector.extract_strided_slice %225 {offsets = [0, 96], sizes = [8, 32], strides = [1, 1]} : vector<8x128xf32> to vector<8x32xf32>
    %236 = math.tanh %235 : vector<8x32xf32>
    %237 = arith.mulf %233, %201 : vector<8x32xf32>
    %238 = arith.mulf %232, %236 : vector<8x32xf32>
    %239 = arith.addf %237, %238 : vector<8x32xf32>
    %240 = math.tanh %239 : vector<8x32xf32>
    %241 = arith.mulf %234, %240 : vector<8x32xf32>
    %242 = vector.extract_strided_slice %12 {offsets = [48, 0], sizes = [8, 128], strides = [1, 1]} : vector<64x128xf32> to vector<8x128xf32>
    %cst_37 = arith.constant dense<0.000000e+00> : vector<8x128xf32>
    %243 = tpu.matmul %222, %0, %cst_37 {dimension_numbers = #tpu.dot_dimension_numbers<[1], [0], [0], [1], [0, 0, 1, 1], [], []>} : vector<8x32xf32>, vector<32x128xf32>, vector<8x128xf32> -> vector<8x128xf32>
    %244 = arith.addf %242, %243 : vector<8x128xf32>
    %245 = vector.extract_strided_slice %244 {offsets = [0, 0], sizes = [8, 96], strides = [1, 1]} : vector<8x128xf32> to vector<8x96xf32>
    %246 = arith.negf %245 : vector<8x96xf32>
    %247 = math.exp %246 : vector<8x96xf32>
    %cst_38 = arith.constant 1.000000e+00 : f32
    %248 = vector.broadcast %cst_38 : f32 to vector<8x96xf32>
    %249 = arith.addf %248, %247 : vector<8x96xf32>
    %250 = arith.divf %248, %249 : vector<8x96xf32>
    %251 = vector.extract_strided_slice %250 {offsets = [0, 0], sizes = [8, 32], strides = [1, 1]} : vector<8x96xf32> to vector<8x32xf32>
    %252 = vector.extract_strided_slice %250 {offsets = [0, 32], sizes = [8, 32], strides = [1, 1]} : vector<8x96xf32> to vector<8x32xf32>
    %253 = vector.extract_strided_slice %250 {offsets = [0, 64], sizes = [8, 32], strides = [1, 1]} : vector<8x96xf32> to vector<8x32xf32>
    %254 = vector.extract_strided_slice %244 {offsets = [0, 96], sizes = [8, 32], strides = [1, 1]} : vector<8x128xf32> to vector<8x32xf32>
    %255 = math.tanh %254 : vector<8x32xf32>
    %256 = arith.mulf %252, %220 : vector<8x32xf32>
    %257 = arith.mulf %251, %255 : vector<8x32xf32>
    %258 = arith.addf %256, %257 : vector<8x32xf32>
    %259 = math.tanh %258 : vector<8x32xf32>
    %260 = arith.mulf %253, %259 : vector<8x32xf32>
    %261 = tpu.concatenate %260, %241 in 1 : vector<8x32xf32>, vector<8x32xf32> -> vector<8x64xf32>
    %cst_39 = arith.constant dense<0.000000e+00> : vector<8x128xf32>
    %262 = tpu.matmul %261, %1, %cst_39 {dimension_numbers = #tpu.dot_dimension_numbers<[1], [0], [0], [1], [0, 0, 1, 1], [], []>} : vector<8x64xf32>, vector<64x128xf32>, vector<8x128xf32> -> vector<8x128xf32>
    %263 = arith.addf %262, %4 : vector<8x128xf32>
    %264 = vector.extract_strided_slice %263 {offsets = [0, 0], sizes = [8, 96], strides = [1, 1]} : vector<8x128xf32> to vector<8x96xf32>
    %265 = arith.negf %264 : vector<8x96xf32>
    %266 = math.exp %265 : vector<8x96xf32>
    %cst_40 = arith.constant 1.000000e+00 : f32
    %267 = vector.broadcast %cst_40 : f32 to vector<8x96xf32>
    %268 = arith.addf %267, %266 : vector<8x96xf32>
    %269 = arith.divf %267, %268 : vector<8x96xf32>
    %270 = vector.extract_strided_slice %269 {offsets = [0, 0], sizes = [8, 32], strides = [1, 1]} : vector<8x96xf32> to vector<8x32xf32>
    %271 = vector.extract_strided_slice %269 {offsets = [0, 32], sizes = [8, 32], strides = [1, 1]} : vector<8x96xf32> to vector<8x32xf32>
    %272 = vector.extract_strided_slice %269 {offsets = [0, 64], sizes = [8, 32], strides = [1, 1]} : vector<8x96xf32> to vector<8x32xf32>
    %273 = vector.extract_strided_slice %263 {offsets = [0, 96], sizes = [8, 32], strides = [1, 1]} : vector<8x128xf32> to vector<8x32xf32>
    %274 = math.tanh %273 : vector<8x32xf32>
    %275 = arith.mulf %271, %239 : vector<8x32xf32>
    %276 = arith.mulf %270, %274 : vector<8x32xf32>
    %277 = arith.addf %275, %276 : vector<8x32xf32>
    %278 = math.tanh %277 : vector<8x32xf32>
    %279 = arith.mulf %272, %278 : vector<8x32xf32>
    %280 = vector.extract_strided_slice %12 {offsets = [56, 0], sizes = [8, 128], strides = [1, 1]} : vector<64x128xf32> to vector<8x128xf32>
    %cst_41 = arith.constant dense<0.000000e+00> : vector<8x128xf32>
    %281 = tpu.matmul %260, %0, %cst_41 {dimension_numbers = #tpu.dot_dimension_numbers<[1], [0], [0], [1], [0, 0, 1, 1], [], []>} : vector<8x32xf32>, vector<32x128xf32>, vector<8x128xf32> -> vector<8x128xf32>
    %282 = arith.addf %280, %281 : vector<8x128xf32>
    %283 = vector.extract_strided_slice %282 {offsets = [0, 0], sizes = [8, 96], strides = [1, 1]} : vector<8x128xf32> to vector<8x96xf32>
    %284 = arith.negf %283 : vector<8x96xf32>
    %285 = math.exp %284 : vector<8x96xf32>
    %cst_42 = arith.constant 1.000000e+00 : f32
    %286 = vector.broadcast %cst_42 : f32 to vector<8x96xf32>
    %287 = arith.addf %286, %285 : vector<8x96xf32>
    %288 = arith.divf %286, %287 : vector<8x96xf32>
    %289 = vector.extract_strided_slice %288 {offsets = [0, 0], sizes = [8, 32], strides = [1, 1]} : vector<8x96xf32> to vector<8x32xf32>
    %290 = vector.extract_strided_slice %288 {offsets = [0, 32], sizes = [8, 32], strides = [1, 1]} : vector<8x96xf32> to vector<8x32xf32>
    %291 = vector.extract_strided_slice %288 {offsets = [0, 64], sizes = [8, 32], strides = [1, 1]} : vector<8x96xf32> to vector<8x32xf32>
    %292 = vector.extract_strided_slice %282 {offsets = [0, 96], sizes = [8, 32], strides = [1, 1]} : vector<8x128xf32> to vector<8x32xf32>
    %293 = math.tanh %292 : vector<8x32xf32>
    %294 = arith.mulf %290, %258 : vector<8x32xf32>
    %295 = arith.mulf %289, %293 : vector<8x32xf32>
    %296 = arith.addf %294, %295 : vector<8x32xf32>
    %297 = math.tanh %296 : vector<8x32xf32>
    %298 = arith.mulf %291, %297 : vector<8x32xf32>
    %299 = tpu.concatenate %298, %279 in 1 : vector<8x32xf32>, vector<8x32xf32> -> vector<8x64xf32>
    %cst_43 = arith.constant dense<0.000000e+00> : vector<8x128xf32>
    %300 = tpu.matmul %299, %1, %cst_43 {dimension_numbers = #tpu.dot_dimension_numbers<[1], [0], [0], [1], [0, 0, 1, 1], [], []>} : vector<8x64xf32>, vector<64x128xf32>, vector<8x128xf32> -> vector<8x128xf32>
    %301 = arith.addf %300, %4 : vector<8x128xf32>
    %302 = vector.extract_strided_slice %301 {offsets = [0, 0], sizes = [8, 96], strides = [1, 1]} : vector<8x128xf32> to vector<8x96xf32>
    %303 = arith.negf %302 : vector<8x96xf32>
    %304 = math.exp %303 : vector<8x96xf32>
    %cst_44 = arith.constant 1.000000e+00 : f32
    %305 = vector.broadcast %cst_44 : f32 to vector<8x96xf32>
    %306 = arith.addf %305, %304 : vector<8x96xf32>
    %307 = arith.divf %305, %306 : vector<8x96xf32>
    %308 = vector.extract_strided_slice %307 {offsets = [0, 0], sizes = [8, 32], strides = [1, 1]} : vector<8x96xf32> to vector<8x32xf32>
    %309 = vector.extract_strided_slice %307 {offsets = [0, 32], sizes = [8, 32], strides = [1, 1]} : vector<8x96xf32> to vector<8x32xf32>
    %310 = vector.extract_strided_slice %307 {offsets = [0, 64], sizes = [8, 32], strides = [1, 1]} : vector<8x96xf32> to vector<8x32xf32>
    %311 = vector.extract_strided_slice %301 {offsets = [0, 96], sizes = [8, 32], strides = [1, 1]} : vector<8x128xf32> to vector<8x32xf32>
    %312 = math.tanh %311 : vector<8x32xf32>
    %313 = arith.mulf %309, %277 : vector<8x32xf32>
    %314 = arith.mulf %308, %312 : vector<8x32xf32>
    %315 = arith.addf %313, %314 : vector<8x32xf32>
    %316 = math.tanh %315 : vector<8x32xf32>
    %317 = arith.mulf %310, %316 : vector<8x32xf32>
    %c0_45 = arith.constant 0 : index
    %c0_46 = arith.constant 0 : index
    %318 = vector.load %arg7[%c0_45, %c0_46] : memref<32x128xf32, #tpu.memory_space<vmem>>, vector<32x128xf32>
    %cst_47 = arith.constant dense<0.000000e+00> : vector<8x128xf32>
    %319 = tpu.matmul %317, %318, %cst_47 {dimension_numbers = #tpu.dot_dimension_numbers<[1], [0], [0], [1], [0, 0, 1, 1], [], []>} : vector<8x32xf32>, vector<32x128xf32>, vector<8x128xf32> -> vector<8x128xf32>
    %c0_48 = arith.constant 0 : index
    %c0_49 = arith.constant 0 : index
    %320 = vector.load %arg8[%c0_48, %c0_49] : memref<1x128xf32, #tpu.memory_space<vmem>>, vector<1x128xf32>
    %321 = vector.broadcast %320 : vector<1x128xf32> to vector<8x128xf32>
    %322 = arith.addf %319, %321 : vector<8x128xf32>
    %c0_50 = arith.constant 0 : index
    %c0_51 = arith.constant 0 : index
    %323 = vector.load %arg9[%c0_50, %c0_51] : memref<8x128xf32, #tpu.memory_space<vmem>>, vector<8x128xf32>
    tpu.vector_store %arg9[%c0_50, %c0_51], %322 {strides = array<i32>} : memref<8x128xf32, #tpu.memory_space<vmem>>, vector<8x128xf32>,
    return
  }
  func.func @transform_0(%arg0: i32) -> (i32, i32, i32) {
    %c0_i32 = arith.constant 0 : i32
    %c0_i32_0 = arith.constant 0 : i32
    %c0_i32_1 = arith.constant 0 : i32
    return %c0_i32, %arg0, %c0_i32_0 : i32, i32, i32
  }
  func.func @transform_1(%arg0: i32) -> (i32, i32) {
    %c0_i32 = arith.constant 0 : i32
    %c0_i32_0 = arith.constant 0 : i32
    %c0_i32_1 = arith.constant 0 : i32
    return %c0_i32, %c0_i32_0 : i32, i32
  }
  func.func @transform_2(%arg0: i32) -> (i32, i32) {
    %c0_i32 = arith.constant 0 : i32
    %c0_i32_0 = arith.constant 0 : i32
    %c0_i32_1 = arith.constant 0 : i32
    return %c0_i32, %c0_i32_0 : i32, i32
  }
  func.func @transform_3(%arg0: i32) -> (i32, i32) {
    %c0_i32 = arith.constant 0 : i32
    %c0_i32_0 = arith.constant 0 : i32
    %c0_i32_1 = arith.constant 0 : i32
    return %c0_i32, %c0_i32_0 : i32, i32
  }
  func.func @transform_4(%arg0: i32) -> (i32, i32) {
    %c0_i32 = arith.constant 0 : i32
    %c0_i32_0 = arith.constant 0 : i32
    %c0_i32_1 = arith.constant 0 : i32
    return %c0_i32, %c0_i32_0 : i32, i32
  }
  func.func @transform_5(%arg0: i32) -> (i32, i32) {
    %c0_i32 = arith.constant 0 : i32
    %c0_i32_0 = arith.constant 0 : i32
    %c0_i32_1 = arith.constant 0 : i32
    return %c0_i32, %c0_i32_0 : i32, i32
  }
  func.func @transform_6(%arg0: i32) -> (i32, i32) {
    %c0_i32 = arith.constant 0 : i32
    %c0_i32_0 = arith.constant 0 : i32
    %c0_i32_1 = arith.constant 0 : i32
    return %c0_i32, %c0_i32_0 : i32, i32
  }
  func.func @transform_7(%arg0: i32) -> (i32, i32) {
    %c0_i32 = arith.constant 0 : i32
    %c0_i32_0 = arith.constant 0 : i32
    %c0_i32_1 = arith.constant 0 : i32
    return %c0_i32, %c0_i32_0 : i32, i32
  }
  func.func @transform_8(%arg0: i32) -> (i32, i32) {
    %c0_i32 = arith.constant 0 : i32
    %c0_i32_0 = arith.constant 0 : i32
    return %arg0, %c0_i32 : i32, i32
  }
}

</mosaic_0001>

<llo_original>
// kernel: tpu_custom_call.1
$region0: #{tpu_custom_call.1}
  #allocation0 [shape = 'u32[]', space=smem, size = 0x4, offset = 0x4, fixed_abs, tag = 'smem constant byte address 0x4 - core index']
  #allocation1 [shape = 'u32[72,128]{1,0:T(1,128)}', space=vmem, size = 0x9000, scoped, tag = 'internal scratch']
  %s0 = inlined_call_operand.hbm [shape: f32[8,8,8], index: 0, kind: input, shape index: {}]
  %s1 = inlined_call_operand.hbm [shape: f32[8,128], index: 1, kind: input, shape index: {}]
  %s2 = inlined_call_operand.vmem [shape: f32[1,128], index: 2, kind: input, shape index: {}]
  %s3 = inlined_call_operand.hbm [shape: f32[32,128], index: 3, kind: input, shape index: {}]
  %s4 = inlined_call_operand.hbm [shape: f32[64,128], index: 4, kind: input, shape index: {}]
  %s5 = inlined_call_operand.vmem [shape: f32[1,128], index: 5, kind: input, shape index: {}]
  %s6 = inlined_call_operand.hbm [shape: f32[32,128], index: 6, kind: input, shape index: {}]
  %s7 = inlined_call_operand.vmem [shape: f32[1,128], index: 7, kind: input, shape index: {}]
  %s8 = inlined_call_operand.hbm [shape: f32[8,128], index: 8, kind: output, shape index: {}]
  %s9 = sld [smem:[#allocation0]]
  $region62: #{tpu_custom_call.1} parent=0
    _
  %s11 = ssub.s32 1, %s9
  %s12 = scalar_select 0, %s11, %s9
  $region1: #{tpu_custom_call.1} parent=0
    #allocation2 [shape = 'u8[32768]{0}', space=vmem, size = 0x8000, scoped, tag = 'input window, operand 0, single buffered']
    #allocation3 [shape = 's32[1]{0}', space=sflag, size = 0x4, scoped, tag = 'scoped memory for tpu_custom_call.1']
    #allocation4 [shape = 's32[1]{0}', space=sflag, size = 0x4, scoped, tag = 'scoped memory for tpu_custom_call.1']
    #allocation5 [shape = 'u8[4096]{0}', space=vmem, size = 0x1000, scoped, tag = 'input window, operand 1, single buffered']
    #allocation6 [shape = 's32[1]{0}', space=sflag, size = 0x4, scoped, tag = 'scoped memory for tpu_custom_call.1']
    #allocation7 [shape = 'u8[16384]{0}', space=vmem, size = 0x4000, scoped, tag = 'input window, operand 3, single buffered']
    #allocation8 [shape = 'u8[32768]{0}', space=vmem, size = 0x8000, scoped, tag = 'input window, operand 4, single buffered']
    #allocation9 [shape = 's32[1]{0}', space=sflag, size = 0x4, scoped, tag = 'scoped memory for tpu_custom_call.1']
    #allocation10 [shape = 'u8[16384]{0}', space=vmem, size = 0x4000, scoped, tag = 'input window, operand 6, single buffered']
    #allocation11 [shape = 'u8[4096]{0}', space=vmem, size = 0x1000, scoped, tag = 'output window, operand 0, single buffered']
    %13 = vsyncpa [#allocation3], 0
    %14 = vsyncpa [#allocation6], 0
    %15 = vsyncpa [#allocation9], 0
    %16 = vsyncpa [#allocation4], 0
    // Predicated region
    $region2: #{tpu_custom_call.1} parent=1 // pred_check
      _
    $region3: #{tpu_custom_call.1} parent=1 // pred_check_branch
      %18 = sbr.rel (0) target = $region5
    $region4: #{tpu_custom_call.1} parent=1 // pred_region
      %20 = vsyncadd [#allocation3], 0
      %s21 = sshll.u32 %s0, 4
      %s22 = int_to_ptr.hbm [resolvable:$true] %s21
      %s23 = sshll.u32 [#allocation2], 4
      %s24 = int_to_ptr.vmem [resolvable:$true] %s23
      %29 = dma.hbm_to_vmem [thread:$0]  %s22, 1024, %s24, [#allocation3], 128, 128, 8
    $region5: #{tpu_custom_call.1} parent=1 // pred_fallthru
      _
    // Predicated region
    $region6: #{tpu_custom_call.1} parent=1 // pred_check
      _
    $region7: #{tpu_custom_call.1} parent=1 // pred_check_branch
      %31 = sbr.rel (0) target = $region9
    $region8: #{tpu_custom_call.1} parent=1 // pred_region
      %33 = vsyncadd [#allocation6], 0
      %s35 = sshll.u32 %s1, 4
      %s36 = int_to_ptr.hbm [resolvable:$true] %s35
      %s37 = sshll.u32 [#allocation5], 4
      %s38 = int_to_ptr.vmem [resolvable:$true] %s37
      %40 = dma.hbm_to_vmem [thread:$0]  %s36, 128, %s38, [#allocation6]
    $region9: #{tpu_custom_call.1} parent=1 // pred_fallthru
      _
    // Predicated region
    $region10: #{tpu_custom_call.1} parent=1 // pred_check
      _
    $region11: #{tpu_custom_call.1} parent=1 // pred_check_branch
      %42 = sbr.rel (0) target = $region13
    $region12: #{tpu_custom_call.1} parent=1 // pred_region
      _
    $region13: #{tpu_custom_call.1} parent=1 // pred_fallthru
      _
    // Predicated region
    $region14: #{tpu_custom_call.1} parent=1 // pred_check
      _
    $region15: #{tpu_custom_call.1} parent=1 // pred_check_branch
      %44 = sbr.rel (0) target = $region17
    $region16: #{tpu_custom_call.1} parent=1 // pred_region
      %46 = vsyncadd [#allocation6], 0
      %s47 = sshll.u32 %s3, 4
      %s48 = int_to_ptr.hbm [resolvable:$true] %s47
      %s49 = sshll.u32 [#allocation7], 4
      %s50 = int_to_ptr.vmem [resolvable:$true] %s49
      %55 = dma.hbm_to_vmem [thread:$0]  %s48, 512, %s50, [#allocation6], 128, 128, 8
    $region17: #{tpu_custom_call.1} parent=1 // pred_fallthru
      _
    // Predicated region
    $region18: #{tpu_custom_call.1} parent=1 // pred_check
      _
    $region19: #{tpu_custom_call.1} parent=1 // pred_check_branch
      %57 = sbr.rel (0) target = $region21
    $region20: #{tpu_custom_call.1} parent=1 // pred_region
      %59 = vsyncadd [#allocation9], 0
      %s60 = sshll.u32 %s4, 4
      %s61 = int_to_ptr.hbm [resolvable:$true] %s60
      %s62 = sshll.u32 [#allocation8], 4
      %s63 = int_to_ptr.vmem [resolvable:$true] %s62
      %68 = dma.hbm_to_vmem [thread:$0]  %s61, 1024, %s63, [#allocation9], 128, 128, 8
    $region21: #{tpu_custom_call.1} parent=1 // pred_fallthru
      _
    // Predicated region
    $region22: #{tpu_custom_call.1} parent=1 // pred_check
      _
    $region23: #{tpu_custom_call.1} parent=1 // pred_check_branch
      %70 = sbr.rel (0) target = $region25
    $region24: #{tpu_custom_call.1} parent=1 // pred_region
      _
    $region25: #{tpu_custom_call.1} parent=1 // pred_fallthru
      _
    // Predicated region
    $region26: #{tpu_custom_call.1} parent=1 // pred_check
      _
    $region27: #{tpu_custom_call.1} parent=1 // pred_check_branch
      %72 = sbr.rel (0) target = $region29
    $region28: #{tpu_custom_call.1} parent=1 // pred_region
      %74 = vsyncadd [#allocation9], 0
      %s75 = sshll.u32 %s6, 4
      %s76 = int_to_ptr.hbm [resolvable:$true] %s75
      %s77 = sshll.u32 [#allocation10], 4
      %s78 = int_to_ptr.vmem [resolvable:$true] %s77
      %83 = dma.hbm_to_vmem [thread:$0]  %s76, 512, %s78, [#allocation9], 128, 128, 8
    $region29: #{tpu_custom_call.1} parent=1 // pred_fallthru
      _
    // Predicated region
    $region30: #{tpu_custom_call.1} parent=1 // pred_check
      _
    $region31: #{tpu_custom_call.1} parent=1 // pred_check_branch
      %85 = sbr.rel (0) target = $region33
    $region32: #{tpu_custom_call.1} parent=1 // pred_region
      _
    $region33: #{tpu_custom_call.1} parent=1 // pred_fallthru
      _
    // Predicated region
    $region34: #{tpu_custom_call.1} parent=1 // pred_check
      _
    $region35: #{tpu_custom_call.1} parent=1 // pred_check_branch
      %87 = sbr.rel (0) target = $region37
    $region36: #{tpu_custom_call.1} parent=1 // pred_region
      %89 = dma.done [#allocation3], 1024
    $region37: #{tpu_custom_call.1} parent=1 // pred_fallthru
      _
    // Predicated region
    $region38: #{tpu_custom_call.1} parent=1 // pred_check
      _
    $region39: #{tpu_custom_call.1} parent=1 // pred_check_branch
      %91 = sbr.rel (0) target = $region41
    $region40: #{tpu_custom_call.1} parent=1 // pred_region
      %93 = dma.done [#allocation6], 128
    $region41: #{tpu_custom_call.1} parent=1 // pred_fallthru
      _
    // Predicated region
    $region42: #{tpu_custom_call.1} parent=1 // pred_check
      _
    $region43: #{tpu_custom_call.1} parent=1 // pred_check_branch
      %95 = sbr.rel (0) target = $region45
    $region44: #{tpu_custom_call.1} parent=1 // pred_region
      %97 = dma.done [#allocation6], 512
    $region45: #{tpu_custom_call.1} parent=1 // pred_fallthru
      _
    // Predicated region
    $region46: #{tpu_custom_call.1} parent=1 // pred_check
      _
    $region47: #{tpu_custom_call.1} parent=1 // pred_check_branch
      %99 = sbr.rel (0) target = $region49
    $region48: #{tpu_custom_call.1} parent=1 // pred_region
      %101 = dma.done [#allocation9], 1024
    $region49: #{tpu_custom_call.1} parent=1 // pred_fallthru
      _
    // Predicated region
    $region50: #{tpu_custom_call.1} parent=1 // pred_check
      _
    $region51: #{tpu_custom_call.1} parent=1 // pred_check_branch
      %103 = sbr.rel (0) target = $region53
    $region52: #{tpu_custom_call.1} parent=1 // pred_region
      %105 = dma.done [#allocation9], 512
    $region53: #{tpu_custom_call.1} parent=1 // pred_fallthru
      _
    %v106 = vld [vmem:[#allocation7] sm:$0xff]
    %v107 = vld [vmem:[#allocation7 + $0x8] sm:$0xff]
    %v108 = vld [vmem:[#allocation7 + $0x10] sm:$0xff]
    %v109 = vld [vmem:[#allocation7 + $0x18] sm:$0xff]
    %v110 = vld [vmem:[#allocation8] sm:$0xff]
    %v111 = vld [vmem:[#allocation8 + $0x8] sm:$0xff]
    %v112 = vld [vmem:[#allocation8 + $0x10] sm:$0xff]
    %v113 = vld [vmem:[#allocation8 + $0x18] sm:$0xff]
    %v114 = vld [vmem:[#allocation8 + $0x20] sm:$0xff]
    %v115 = vld [vmem:[#allocation8 + $0x28] sm:$0xff]
    %v116 = vld [vmem:[#allocation8 + $0x30] sm:$0xff]
    %v117 = vld [vmem:[#allocation8 + $0x38] sm:$0xff]
    %v118 = vld [vmem:[%s5] sm:$0x1]
    %v120 = vperm.slane %v118, 0
    %v122 = vld [vmem:[#allocation2] sm:$0xff]
    %v123 = vld [vmem:[#allocation2 + $0x8] sm:$0xff]
    %v124 = vld [vmem:[#allocation2 + $0x10] sm:$0xff]
    %v125 = vld [vmem:[#allocation2 + $0x18] sm:$0xff]
    %v126 = vld [vmem:[#allocation2 + $0x20] sm:$0xff]
    %v127 = vld [vmem:[#allocation2 + $0x28] sm:$0xff]
    %v128 = vld [vmem:[#allocation2 + $0x30] sm:$0xff]
    %v129 = vld [vmem:[#allocation2 + $0x38] sm:$0xff]
    %v130 = vld [vmem:[#allocation5] sm:$0xff]
    %v131 = vld [vmem:[%s2] sm:$0x1]
    %v133 = vperm.slane %v131, 0
    %vm135 = vcmask 64512
    %v137 = vsel %vm135, %v122, 0
    %v140 = vsel %vm135, %v123, 0
    %v143 = vsel %vm135, %v124, 0
    %v146 = vsel %vm135, %v125, 0
    %v149 = vsel %vm135, %v126, 0
    %v152 = vsel %vm135, %v127, 0
    %v155 = vsel %vm135, %v128, 0
    %v158 = vsel %vm135, %v129, 0
    %160 = vmatpush.msra.mxu0 0.0
    %161 = vmatpush.msra.mxu0 0.0
    %162 = vmatpush.msra.mxu0 0.0
    %163 = vmatpush.msra.mxu0 0.0
    %164 = vmatpush.msra.mxu0 0.0
    %165 = vmatpush.msra.mxu0 0.0
    %166 = vmatpush.msra.mxu0 0.0
    %167 = vmatpush.msra.mxu0 0.0
    %168 = vmatpush.msra.mxu0 0.0
    %169 = vmatpush.msra.mxu0 0.0
    %170 = vmatpush.msra.mxu0 0.0
    %171 = vmatpush.msra.mxu0 0.0
    %172 = vmatpush.msra.mxu0 0.0
    %173 = vmatpush.msra.mxu0 0.0
    %174 = vmatpush.msra.mxu0 0.0
    %175 = vmatpush.msra.mxu0 %v130
    %176 = vmatmul.f32.gmra.mxu0 %v137
    %v177 = vpop.f32.mrf.mxu0
    %v178 = vadd.f32 %v133, %v177
    %179 = vmatmul.f32.gmra.mxu0 %v140
    %v180 = vpop.f32.mrf.mxu0
    %v181 = vadd.f32 %v133, %v180
    %182 = vmatmul.f32.gmra.mxu0 %v143
    %v183 = vpop.f32.mrf.mxu0
    %v184 = vadd.f32 %v133, %v183
    %185 = vmatmul.f32.gmra.mxu0 %v146
    %v186 = vpop.f32.mrf.mxu0
    %v187 = vadd.f32 %v133, %v186
    %188 = vmatmul.f32.gmra.mxu0 %v149
    %v189 = vpop.f32.mrf.mxu0
    %v190 = vadd.f32 %v133, %v189
    %191 = vmatmul.f32.gmra.mxu0 %v152
    %v192 = vpop.f32.mrf.mxu0
    %v193 = vadd.f32 %v133, %v192
    %194 = vmatmul.f32.gmra.mxu0 %v155
    %v195 = vpop.f32.mrf.mxu0
    %v196 = vadd.f32 %v133, %v195
    %197 = vmatmul.f32.gmra.mxu0 %v158
    %v198 = vpop.f32.mrf.mxu0
    %v199 = vadd.f32 %v133, %v198
    %200 = vdwg.mxu0
    %vm201 = vcmask 261120
    %v203 = vsel %vm201, 0.0, 0
    %205 = vmatpush.msra.mxu0 0.0
    %206 = vmatpush.msra.mxu0 0.0
    %207 = vmatpush.msra.mxu0 0.0
    %208 = vmatpush.msra.mxu0 0.0
    %209 = vmatpush.msra.mxu0 0.0
    %210 = vmatpush.msra.mxu0 0.0
    %211 = vmatpush.msra.mxu0 0.0
    %212 = vmatpush.msra.mxu0 0.0
    %213 = vmatpush.msra.mxu0 0.0
    %214 = vmatpush.msra.mxu0 0.0
    %215 = vmatpush.msra.mxu0 0.0
    %216 = vmatpush.msra.mxu0 0.0
    %217 = vmatpush.msra.mxu0 %v109
    %218 = vmatpush.msra.mxu0 %v108
    %219 = vmatpush.msra.mxu0 %v107
    %220 = vmatpush.msra.mxu0 %v106
    %221 = vmatmul.f32.gmra.mxu0 %v203
    %v222 = vpop.f32.mrf.mxu0
    %v223 = vadd.f32 0.0, %v222
    %224 = vdwg.mxu0
    %v225 = vadd.f32 %v178, %v223
    %v226 = vxor.u32 %v225, 2147483648
    %v227 = vmul.f32 %v226, 1.442695
    %v228 = vpow.pop %v227
    %v229 = vadd.f32 %v228, 1.0
    %v230 = vrcp.pop %v229
    %v231 = vmul.f32 %v229, %v230
    %v232 = vsub.f32 1.0, %v231
    %v233 = vmul.f32 %v230, %v232
    %v234 = vadd.f32 %v230, %v233
    %vm235 = vweird.f32 %v229
    %vm236 = vweird.f32 %v230
    %vm237 = vmor %vm235, %vm236
    %v238 = vsel %vm237, %v230, %v234
    %v239 = vand.u32 2147483647, %v229
    %vm240 = vcmp.eq.f32.partialorder %v239, 8.507059e+37
    %v241 = vand.u32 %v229, 2147483648
    %v242 = vor.u32 1.1754944e-38, %v241
    %v243 = vsel %vm240, %v242, %v238
    %v244 = vmul.f32 1.0, %v243
    %v245 = vtanh.pop %v225
    %v246 = vmul.f32 %v244, 0.0
    %248 = vrot.lane.b32.xlu0 %v245, 32
    %v249 = vpop.permute.xlu0 %248
    %v251 = vmul.f32 %v244, %v249
    %253 = vrot.lane.b32.xlu0 %v251, 32
    %v254 = vpop.permute.xlu0 %253
    %v256 = vadd.f32 %v246, %v254
    %v257 = vtanh.pop %v256
    %259 = vrot.lane.b32.xlu0 %v257, 32
    %v260 = vpop.permute.xlu0 %259
    %v262 = vmul.f32 %v244, %v260
    %264 = vrot.lane.b32.xlu0 %v262, 64
    %v265 = vpop.permute.xlu0 %264
    %v267 = vsel %vm201, %v265, 0.0
    %vm268 = vcmask 523264
    %v270 = vsel %vm268, %v267, 0
    %272 = vmatpush.msra.mxu0 0.0
    %273 = vmatpush.msra.mxu0 0.0
    %274 = vmatpush.msra.mxu0 0.0
    %275 = vmatpush.msra.mxu0 0.0
    %276 = vmatpush.msra.mxu0 0.0
    %277 = vmatpush.msra.mxu0 0.0
    %278 = vmatpush.msra.mxu0 0.0
    %279 = vmatpush.msra.mxu0 0.0
    %280 = vmatpush.msra.mxu0 %v117
    %281 = vmatpush.msra.mxu0 %v116
    %282 = vmatpush.msra.mxu0 %v115
    %283 = vmatpush.msra.mxu0 %v114
    %284 = vmatpush.msra.mxu0 %v113
    %285 = vmatpush.msra.mxu0 %v112
    %286 = vmatpush.msra.mxu0 %v111
    %287 = vmatpush.msra.mxu0 %v110
    %288 = vmatmul.f32.gmra.mxu0 %v270
    %v289 = vpop.f32.mrf.mxu0
    %v290 = vadd.f32 %v120, %v289
    %291 = vdwg.mxu0
    %v292 = vxor.u32 %v290, 2147483648
    %v293 = vmul.f32 %v292, 1.442695
    %v294 = vpow.pop %v293
    %v295 = vadd.f32 %v294, 1.0
    %v296 = vrcp.pop %v295
    %v297 = vmul.f32 %v295, %v296
    %v298 = vsub.f32 1.0, %v297
    %v299 = vmul.f32 %v296, %v298
    %v300 = vadd.f32 %v296, %v299
    %vm301 = vweird.f32 %v295
    %vm302 = vweird.f32 %v296
    %vm303 = vmor %vm301, %vm302
    %v304 = vsel %vm303, %v296, %v300
    %v305 = vand.u32 2147483647, %v295
    %vm306 = vcmp.eq.f32.partialorder %v305, 8.507059e+37
    %v307 = vand.u32 %v295, 2147483648
    %v308 = vor.u32 1.1754944e-38, %v307
    %v309 = vsel %vm306, %v308, %v304
    %v310 = vmul.f32 1.0, %v309
    %v311 = vtanh.pop %v290
    %v312 = vmul.f32 %v310, 0.0
    %314 = vrot.lane.b32.xlu0 %v311, 32
    %v315 = vpop.permute.xlu0 %314
    %v317 = vmul.f32 %v310, %v315
    %319 = vrot.lane.b32.xlu0 %v317, 32
    %v320 = vpop.permute.xlu0 %319
    %v322 = vadd.f32 %v312, %v320
    %v323 = vtanh.pop %v322
    %325 = vrot.lane.b32.xlu0 %v323, 32
    %v326 = vpop.permute.xlu0 %325
    %v328 = vmul.f32 %v310, %v326
    %v329 = vsel %vm201, %v265, 0
    %331 = vmatpush.msra.mxu0 0.0
    %332 = vmatpush.msra.mxu0 0.0
    %333 = vmatpush.msra.mxu0 0.0
    %334 = vmatpush.msra.mxu0 0.0
    %335 = vmatpush.msra.mxu0 0.0
    %336 = vmatpush.msra.mxu0 0.0
    %337 = vmatpush.msra.mxu0 0.0
    %338 = vmatpush.msra.mxu0 0.0
    %339 = vmatpush.msra.mxu0 0.0
    %340 = vmatpush.msra.mxu0 0.0
    %341 = vmatpush.msra.mxu0 0.0
    %342 = vmatpush.msra.mxu0 0.0
    %343 = vmatpush.msra.mxu0 %v109
    %344 = vmatpush.msra.mxu0 %v108
    %345 = vmatpush.msra.mxu0 %v107
    %346 = vmatpush.msra.mxu0 %v106
    %347 = vmatmul.f32.gmra.mxu0 %v329
    %v348 = vpop.f32.mrf.mxu0
    %v349 = vadd.f32 0.0, %v348
    %350 = vdwg.mxu0
    %v351 = vadd.f32 %v181, %v349
    %v352 = vxor.u32 %v351, 2147483648
    %v353 = vmul.f32 %v352, 1.442695
    %v354 = vpow.pop %v353
    %v355 = vadd.f32 %v354, 1.0
    %v356 = vrcp.pop %v355
    %v357 = vmul.f32 %v355, %v356
    %v358 = vsub.f32 1.0, %v357
    %v359 = vmul.f32 %v356, %v358
    %v360 = vadd.f32 %v356, %v359
    %vm361 = vweird.f32 %v355
    %vm362 = vweird.f32 %v356
    %vm363 = vmor %vm361, %vm362
    %v364 = vsel %vm363, %v356, %v360
    %v365 = vand.u32 2147483647, %v355
    %vm366 = vcmp.eq.f32.partialorder %v365, 8.507059e+37
    %v367 = vand.u32 %v355, 2147483648
    %v368 = vor.u32 1.1754944e-38, %v367
    %v369 = vsel %vm366, %v368, %v364
    %v370 = vmul.f32 1.0, %v369
    %v371 = vtanh.pop %v351
    %v372 = vmul.f32 %v370, %v256
    %374 = vrot.lane.b32.xlu0 %v371, 32
    %v375 = vpop.permute.xlu0 %374
    %v377 = vmul.f32 %v370, %v375
    %379 = vrot.lane.b32.xlu0 %v377, 32
    %v380 = vpop.permute.xlu0 %379
    %v382 = vadd.f32 %v372, %v380
    %v383 = vtanh.pop %v382
    %385 = vrot.lane.b32.xlu0 %v383, 32
    %v386 = vpop.permute.xlu0 %385
    %v388 = vmul.f32 %v370, %v386
    %390 = vrot.lane.b32.xlu0 %v388, 64
    %v391 = vpop.permute.xlu0 %390
    %394 = vrot.lane.b32.xlu0 %v328, 96
    %v395 = vpop.permute.xlu0 %394
    %v397 = vsel %vm201, %v391, %v395
    %v399 = vsel %vm268, %v397, 0
    %401 = vmatpush.msra.mxu0 0.0
    %402 = vmatpush.msra.mxu0 0.0
    %403 = vmatpush.msra.mxu0 0.0
    %404 = vmatpush.msra.mxu0 0.0
    %405 = vmatpush.msra.mxu0 0.0
    %406 = vmatpush.msra.mxu0 0.0
    %407 = vmatpush.msra.mxu0 0.0
    %408 = vmatpush.msra.mxu0 0.0
    %409 = vmatpush.msra.mxu0 %v117
    %410 = vmatpush.msra.mxu0 %v116
    %411 = vmatpush.msra.mxu0 %v115
    %412 = vmatpush.msra.mxu0 %v114
    %413 = vmatpush.msra.mxu0 %v113
    %414 = vmatpush.msra.mxu0 %v112
    %415 = vmatpush.msra.mxu0 %v111
    %416 = vmatpush.msra.mxu0 %v110
    %417 = vmatmul.f32.gmra.mxu0 %v399
    %v418 = vpop.f32.mrf.mxu0
    %v419 = vadd.f32 %v120, %v418
    %420 = vdwg.mxu0
    %v421 = vxor.u32 %v419, 2147483648
    %v422 = vmul.f32 %v421, 1.442695
    %v423 = vpow.pop %v422
    %v424 = vadd.f32 %v423, 1.0
    %v425 = vrcp.pop %v424
    %v426 = vmul.f32 %v424, %v425
    %v427 = vsub.f32 1.0, %v426
    %v428 = vmul.f32 %v425, %v427
    %v429 = vadd.f32 %v425, %v428
    %vm430 = vweird.f32 %v424
    %vm431 = vweird.f32 %v425
    %vm432 = vmor %vm430, %vm431
    %v433 = vsel %vm432, %v425, %v429
    %v434 = vand.u32 2147483647, %v424
    %vm435 = vcmp.eq.f32.partialorder %v434, 8.507059e+37
    %v436 = vand.u32 %v424, 2147483648
    %v437 = vor.u32 1.1754944e-38, %v436
    %v438 = vsel %vm435, %v437, %v433
    %v439 = vmul.f32 1.0, %v438
    %v440 = vtanh.pop %v419
    %v441 = vmul.f32 %v439, %v322
    %443 = vrot.lane.b32.xlu0 %v440, 32
    %v444 = vpop.permute.xlu0 %443
    %v446 = vmul.f32 %v439, %v444
    %448 = vrot.lane.b32.xlu0 %v446, 32
    %v449 = vpop.permute.xlu0 %448
    %v451 = vadd.f32 %v441, %v449
    %v452 = vtanh.pop %v451
    %454 = vrot.lane.b32.xlu0 %v452, 32
    %v455 = vpop.permute.xlu0 %454
    %v457 = vmul.f32 %v439, %v455
    %v458 = vsel %vm201, %v391, 0
    %460 = vmatpush.msra.mxu0 0.0
    %461 = vmatpush.msra.mxu0 0.0
    %462 = vmatpush.msra.mxu0 0.0
    %463 = vmatpush.msra.mxu0 0.0
    %464 = vmatpush.msra.mxu0 0.0
    %465 = vmatpush.msra.mxu0 0.0
    %466 = vmatpush.msra.mxu0 0.0
    %467 = vmatpush.msra.mxu0 0.0
    %468 = vmatpush.msra.mxu0 0.0
    %469 = vmatpush.msra.mxu0 0.0
    %470 = vmatpush.msra.mxu0 0.0
    %471 = vmatpush.msra.mxu0 0.0
    %472 = vmatpush.msra.mxu0 %v109
    %473 = vmatpush.msra.mxu0 %v108
    %474 = vmatpush.msra.mxu0 %v107
    %475 = vmatpush.msra.mxu0 %v106
    %476 = vmatmul.f32.gmra.mxu0 %v458
    %v477 = vpop.f32.mrf.mxu0
    %v478 = vadd.f32 0.0, %v477
    %479 = vdwg.mxu0
    %v480 = vadd.f32 %v184, %v478
    %v481 = vxor.u32 %v480, 2147483648
    %v482 = vmul.f32 %v481, 1.442695
    %v483 = vpow.pop %v482
    %v484 = vadd.f32 %v483, 1.0
    %v485 = vrcp.pop %v484
    %v486 = vmul.f32 %v484, %v485
    %v487 = vsub.f32 1.0, %v486
    %v488 = vmul.f32 %v485, %v487
    %v489 = vadd.f32 %v485, %v488
    %vm490 = vweird.f32 %v484
    %vm491 = vweird.f32 %v485
    %vm492 = vmor %vm490, %vm491
    %v493 = vsel %vm492, %v485, %v489
    %v494 = vand.u32 2147483647, %v484
    %vm495 = vcmp.eq.f32.partialorder %v494, 8.507059e+37
    %v496 = vand.u32 %v484, 2147483648
    %v497 = vor.u32 1.1754944e-38, %v496
    %v498 = vsel %vm495, %v497, %v493
    %v499 = vmul.f32 1.0, %v498
    %v500 = vtanh.pop %v480
    %v501 = vmul.f32 %v499, %v382
    %503 = vrot.lane.b32.xlu0 %v500, 32
    %v504 = vpop.permute.xlu0 %503
    %v506 = vmul.f32 %v499, %v504
    %508 = vrot.lane.b32.xlu0 %v506, 32
    %v509 = vpop.permute.xlu0 %508
    %v511 = vadd.f32 %v501, %v509
    %v512 = vtanh.pop %v511
    %514 = vrot.lane.b32.xlu0 %v512, 32
    %v515 = vpop.permute.xlu0 %514
    %v517 = vmul.f32 %v499, %v515
    %519 = vrot.lane.b32.xlu0 %v517, 64
    %v520 = vpop.permute.xlu0 %519
    %523 = vrot.lane.b32.xlu0 %v457, 96
    %v524 = vpop.permute.xlu0 %523
    %v526 = vsel %vm201, %v520, %v524
    %v528 = vsel %vm268, %v526, 0
    %530 = vmatpush.msra.mxu0 0.0
    %531 = vmatpush.msra.mxu0 0.0
    %532 = vmatpush.msra.mxu0 0.0
    %533 = vmatpush.msra.mxu0 0.0
    %534 = vmatpush.msra.mxu0 0.0
    %535 = vmatpush.msra.mxu0 0.0
    %536 = vmatpush.msra.mxu0 0.0
    %537 = vmatpush.msra.mxu0 0.0
    %538 = vmatpush.msra.mxu0 %v117
    %539 = vmatpush.msra.mxu0 %v116
    %540 = vmatpush.msra.mxu0 %v115
    %541 = vmatpush.msra.mxu0 %v114
    %542 = vmatpush.msra.mxu0 %v113
    %543 = vmatpush.msra.mxu0 %v112
    %544 = vmatpush.msra.mxu0 %v111
    %545 = vmatpush.msra.mxu0 %v110
    %546 = vmatmul.f32.gmra.mxu0 %v528
    %v547 = vpop.f32.mrf.mxu0
    %v548 = vadd.f32 %v120, %v547
    %549 = vdwg.mxu0
    %v550 = vxor.u32 %v548, 2147483648
    %v551 = vmul.f32 %v550, 1.442695
    %v552 = vpow.pop %v551
    %v553 = vadd.f32 %v552, 1.0
    %v554 = vrcp.pop %v553
    %v555 = vmul.f32 %v553, %v554
    %v556 = vsub.f32 1.0, %v555
    %v557 = vmul.f32 %v554, %v556
    %v558 = vadd.f32 %v554, %v557
    %vm559 = vweird.f32 %v553
    %vm560 = vweird.f32 %v554
    %vm561 = vmor %vm559, %vm560
    %v562 = vsel %vm561, %v554, %v558
    %v563 = vand.u32 2147483647, %v553
    %vm564 = vcmp.eq.f32.partialorder %v563, 8.507059e+37
    %v565 = vand.u32 %v553, 2147483648
    %v566 = vor.u32 1.1754944e-38, %v565
    %v567 = vsel %vm564, %v566, %v562
    %v568 = vmul.f32 1.0, %v567
    %v569 = vtanh.pop %v548
    %v570 = vmul.f32 %v568, %v451
    %572 = vrot.lane.b32.xlu0 %v569, 32
    %v573 = vpop.permute.xlu0 %572
    %v575 = vmul.f32 %v568, %v573
    %577 = vrot.lane.b32.xlu0 %v575, 32
    %v578 = vpop.permute.xlu0 %577
    %v580 = vadd.f32 %v570, %v578
    %v581 = vtanh.pop %v580
    %583 = vrot.lane.b32.xlu0 %v581, 32
    %v584 = vpop.permute.xlu0 %583
    %v586 = vmul.f32 %v568, %v584
    %v587 = vsel %vm201, %v520, 0
    %589 = vmatpush.msra.mxu0 0.0
    %590 = vmatpush.msra.mxu0 0.0
    %591 = vmatpush.msra.mxu0 0.0
    %592 = vmatpush.msra.mxu0 0.0
    %593 = vmatpush.msra.mxu0 0.0
    %594 = vmatpush.msra.mxu0 0.0
    %595 = vmatpush.msra.mxu0 0.0
    %596 = vmatpush.msra.mxu0 0.0
    %597 = vmatpush.msra.mxu0 0.0
    %598 = vmatpush.msra.mxu0 0.0
    %599 = vmatpush.msra.mxu0 0.0
    %600 = vmatpush.msra.mxu0 0.0
    %601 = vmatpush.msra.mxu0 %v109
    %602 = vmatpush.msra.mxu0 %v108
    %603 = vmatpush.msra.mxu0 %v107
    %604 = vmatpush.msra.mxu0 %v106
    %605 = vmatmul.f32.gmra.mxu0 %v587
    %v606 = vpop.f32.mrf.mxu0
    %v607 = vadd.f32 0.0, %v606
    %608 = vdwg.mxu0
    %v609 = vadd.f32 %v187, %v607
    %v610 = vxor.u32 %v609, 2147483648
    %v611 = vmul.f32 %v610, 1.442695
    %v612 = vpow.pop %v611
    %v613 = vadd.f32 %v612, 1.0
    %v614 = vrcp.pop %v613
    %v615 = vmul.f32 %v613, %v614
    %v616 = vsub.f32 1.0, %v615
    %v617 = vmul.f32 %v614, %v616
    %v618 = vadd.f32 %v614, %v617
    %vm619 = vweird.f32 %v613
    %vm620 = vweird.f32 %v614
    %vm621 = vmor %vm619, %vm620
    %v622 = vsel %vm621, %v614, %v618
    %v623 = vand.u32 2147483647, %v613
    %vm624 = vcmp.eq.f32.partialorder %v623, 8.507059e+37
    %v625 = vand.u32 %v613, 2147483648
    %v626 = vor.u32 1.1754944e-38, %v625
    %v627 = vsel %vm624, %v626, %v622
    %v628 = vmul.f32 1.0, %v627
    %v629 = vtanh.pop %v609
    %v630 = vmul.f32 %v628, %v511
    %632 = vrot.lane.b32.xlu0 %v629, 32
    %v633 = vpop.permute.xlu0 %632
    %v635 = vmul.f32 %v628, %v633
    %637 = vrot.lane.b32.xlu0 %v635, 32
    %v638 = vpop.permute.xlu0 %637
    %v640 = vadd.f32 %v630, %v638
    %v641 = vtanh.pop %v640
    %643 = vrot.lane.b32.xlu0 %v641, 32
    %v644 = vpop.permute.xlu0 %643
    %v646 = vmul.f32 %v628, %v644
    %648 = vrot.lane.b32.xlu0 %v646, 64
    %v649 = vpop.permute.xlu0 %648
    %652 = vrot.lane.b32.xlu0 %v586, 96
    %v653 = vpop.permute.xlu0 %652
    %v655 = vsel %vm201, %v649, %v653
    %v657 = vsel %vm268, %v655, 0
    %659 = vmatpush.msra.mxu0 0.0
    %660 = vmatpush.msra.mxu0 0.0
    %661 = vmatpush.msra.mxu0 0.0
    %662 = vmatpush.msra.mxu0 0.0
    %663 = vmatpush.msra.mxu0 0.0
    %664 = vmatpush.msra.mxu0 0.0
    %665 = vmatpush.msra.mxu0 0.0
    %666 = vmatpush.msra.mxu0 0.0
    %667 = vmatpush.msra.mxu0 %v117
    %668 = vmatpush.msra.mxu0 %v116
    %669 = vmatpush.msra.mxu0 %v115
    %670 = vmatpush.msra.mxu0 %v114
    %671 = vmatpush.msra.mxu0 %v113
    %672 = vmatpush.msra.mxu0 %v112
    %673 = vmatpush.msra.mxu0 %v111
    %674 = vmatpush.msra.mxu0 %v110
    %675 = vmatmul.f32.gmra.mxu0 %v657
    %v676 = vpop.f32.mrf.mxu0
    %v677 = vadd.f32 %v120, %v676
    %678 = vdwg.mxu0
    %v679 = vxor.u32 %v677, 2147483648
    %v680 = vmul.f32 %v679, 1.442695
    %v681 = vpow.pop %v680
    %v682 = vadd.f32 %v681, 1.0
    %v683 = vrcp.pop %v682
    %v684 = vmul.f32 %v682, %v683
    %v685 = vsub.f32 1.0, %v684
    %v686 = vmul.f32 %v683, %v685
    %v687 = vadd.f32 %v683, %v686
    %vm688 = vweird.f32 %v682
    %vm689 = vweird.f32 %v683
    %vm690 = vmor %vm688, %vm689
    %v691 = vsel %vm690, %v683, %v687
    %v692 = vand.u32 2147483647, %v682
    %vm693 = vcmp.eq.f32.partialorder %v692, 8.507059e+37
    %v694 = vand.u32 %v682, 2147483648
    %v695 = vor.u32 1.1754944e-38, %v694
    %v696 = vsel %vm693, %v695, %v691
    %v697 = vmul.f32 1.0, %v696
    %v698 = vtanh.pop %v677
    %v699 = vmul.f32 %v697, %v580
    %701 = vrot.lane.b32.xlu0 %v698, 32
    %v702 = vpop.permute.xlu0 %701
    %v704 = vmul.f32 %v697, %v702
    %706 = vrot.lane.b32.xlu0 %v704, 32
    %v707 = vpop.permute.xlu0 %706
    %v709 = vadd.f32 %v699, %v707
    %v710 = vtanh.pop %v709
    %712 = vrot.lane.b32.xlu0 %v710, 32
    %v713 = vpop.permute.xlu0 %712
    %v715 = vmul.f32 %v697, %v713
    %v716 = vsel %vm201, %v649, 0
    %718 = vmatpush.msra.mxu0 0.0
    %719 = vmatpush.msra.mxu0 0.0
    %720 = vmatpush.msra.mxu0 0.0
    %721 = vmatpush.msra.mxu0 0.0
    %722 = vmatpush.msra.mxu0 0.0
    %723 = vmatpush.msra.mxu0 0.0
    %724 = vmatpush.msra.mxu0 0.0
    %725 = vmatpush.msra.mxu0 0.0
    %726 = vmatpush.msra.mxu0 0.0
    %727 = vmatpush.msra.mxu0 0.0
    %728 = vmatpush.msra.mxu0 0.0
    %729 = vmatpush.msra.mxu0 0.0
    %730 = vmatpush.msra.mxu0 %v109
    %731 = vmatpush.msra.mxu0 %v108
    %732 = vmatpush.msra.mxu0 %v107
    %733 = vmatpush.msra.mxu0 %v106
    %734 = vmatmul.f32.gmra.mxu0 %v716
    %v735 = vpop.f32.mrf.mxu0
    %v736 = vadd.f32 0.0, %v735
    %737 = vdwg.mxu0
    %v738 = vadd.f32 %v190, %v736
    %v739 = vxor.u32 %v738, 2147483648
    %v740 = vmul.f32 %v739, 1.442695
    %v741 = vpow.pop %v740
    %v742 = vadd.f32 %v741, 1.0
    %v743 = vrcp.pop %v742
    %v744 = vmul.f32 %v742, %v743
    %v745 = vsub.f32 1.0, %v744
    %v746 = vmul.f32 %v743, %v745
    %v747 = vadd.f32 %v743, %v746
    %vm748 = vweird.f32 %v742
    %vm749 = vweird.f32 %v743
    %vm750 = vmor %vm748, %vm749
    %v751 = vsel %vm750, %v743, %v747
    %v752 = vand.u32 2147483647, %v742
    %vm753 = vcmp.eq.f32.partialorder %v752, 8.507059e+37
    %v754 = vand.u32 %v742, 2147483648
    %v755 = vor.u32 1.1754944e-38, %v754
    %v756 = vsel %vm753, %v755, %v751
    %v757 = vmul.f32 1.0, %v756
    %v758 = vtanh.pop %v738
    %v759 = vmul.f32 %v757, %v640
    %761 = vrot.lane.b32.xlu0 %v758, 32
    %v762 = vpop.permute.xlu0 %761
    %v764 = vmul.f32 %v757, %v762
    %766 = vrot.lane.b32.xlu0 %v764, 32
    %v767 = vpop.permute.xlu0 %766
    %v769 = vadd.f32 %v759, %v767
    %v770 = vtanh.pop %v769
    %772 = vrot.lane.b32.xlu0 %v770, 32
    %v773 = vpop.permute.xlu0 %772
    %v775 = vmul.f32 %v757, %v773
    %777 = vrot.lane.b32.xlu0 %v775, 64
    %v778 = vpop.permute.xlu0 %777
    %781 = vrot.lane.b32.xlu0 %v715, 96
    %v782 = vpop.permute.xlu0 %781
    %v784 = vsel %vm201, %v778, %v782
    %v786 = vsel %vm268, %v784, 0
    %788 = vmatpush.msra.mxu0 0.0
    %789 = vmatpush.msra.mxu0 0.0
    %790 = vmatpush.msra.mxu0 0.0
    %791 = vmatpush.msra.mxu0 0.0
    %792 = vmatpush.msra.mxu0 0.0
    %793 = vmatpush.msra.mxu0 0.0
    %794 = vmatpush.msra.mxu0 0.0
    %795 = vmatpush.msra.mxu0 0.0
    %796 = vmatpush.msra.mxu0 %v117
    %797 = vmatpush.msra.mxu0 %v116
    %798 = vmatpush.msra.mxu0 %v115
    %799 = vmatpush.msra.mxu0 %v114
    %800 = vmatpush.msra.mxu0 %v113
    %801 = vmatpush.msra.mxu0 %v112
    %802 = vmatpush.msra.mxu0 %v111
    %803 = vmatpush.msra.mxu0 %v110
    %804 = vmatmul.f32.gmra.mxu0 %v786
    %v805 = vpop.f32.mrf.mxu0
    %v806 = vadd.f32 %v120, %v805
    %807 = vdwg.mxu0
    %v808 = vxor.u32 %v806, 2147483648
    %v809 = vmul.f32 %v808, 1.442695
    %v810 = vpow.pop %v809
    %v811 = vadd.f32 %v810, 1.0
    %v812 = vrcp.pop %v811
    %v813 = vmul.f32 %v811, %v812
    %v814 = vsub.f32 1.0, %v813
    %v815 = vmul.f32 %v812, %v814
    %v816 = vadd.f32 %v812, %v815
    %vm817 = vweird.f32 %v811
    %vm818 = vweird.f32 %v812
    %vm819 = vmor %vm817, %vm818
    %v820 = vsel %vm819, %v812, %v816
    %v821 = vand.u32 2147483647, %v811
    %vm822 = vcmp.eq.f32.partialorder %v821, 8.507059e+37
    %v823 = vand.u32 %v811, 2147483648
    %v824 = vor.u32 1.1754944e-38, %v823
    %v825 = vsel %vm822, %v824, %v820
    %v826 = vmul.f32 1.0, %v825
    %v827 = vtanh.pop %v806
    %v828 = vmul.f32 %v826, %v709
    %830 = vrot.lane.b32.xlu0 %v827, 32
    %v831 = vpop.permute.xlu0 %830
    %v833 = vmul.f32 %v826, %v831
    %835 = vrot.lane.b32.xlu0 %v833, 32
    %v836 = vpop.permute.xlu0 %835
    %v838 = vadd.f32 %v828, %v836
    %v839 = vtanh.pop %v838
    %841 = vrot.lane.b32.xlu0 %v839, 32
    %v842 = vpop.permute.xlu0 %841
    %v844 = vmul.f32 %v826, %v842
    %v845 = vsel %vm201, %v778, 0
    %847 = vmatpush.msra.mxu0 0.0
    %848 = vmatpush.msra.mxu0 0.0
    %849 = vmatpush.msra.mxu0 0.0
    %850 = vmatpush.msra.mxu0 0.0
    %851 = vmatpush.msra.mxu0 0.0
    %852 = vmatpush.msra.mxu0 0.0
    %853 = vmatpush.msra.mxu0 0.0
    %854 = vmatpush.msra.mxu0 0.0
    %855 = vmatpush.msra.mxu0 0.0
    %856 = vmatpush.msra.mxu0 0.0
    %857 = vmatpush.msra.mxu0 0.0
    %858 = vmatpush.msra.mxu0 0.0
    %859 = vmatpush.msra.mxu0 %v109
    %860 = vmatpush.msra.mxu0 %v108
    %861 = vmatpush.msra.mxu0 %v107
    %862 = vmatpush.msra.mxu0 %v106
    %863 = vmatmul.f32.gmra.mxu0 %v845
    %v864 = vpop.f32.mrf.mxu0
    %v865 = vadd.f32 0.0, %v864
    %866 = vdwg.mxu0
    %v867 = vadd.f32 %v193, %v865
    %v868 = vxor.u32 %v867, 2147483648
    %v869 = vmul.f32 %v868, 1.442695
    %v870 = vpow.pop %v869
    %v871 = vadd.f32 %v870, 1.0
    %v872 = vrcp.pop %v871
    %v873 = vmul.f32 %v871, %v872
    %v874 = vsub.f32 1.0, %v873
    %v875 = vmul.f32 %v872, %v874
    %v876 = vadd.f32 %v872, %v875
    %vm877 = vweird.f32 %v871
    %vm878 = vweird.f32 %v872
    %vm879 = vmor %vm877, %vm878
    %v880 = vsel %vm879, %v872, %v876
    %v881 = vand.u32 2147483647, %v871
    %vm882 = vcmp.eq.f32.partialorder %v881, 8.507059e+37
    %v883 = vand.u32 %v871, 2147483648
    %v884 = vor.u32 1.1754944e-38, %v883
    %v885 = vsel %vm882, %v884, %v880
    %v886 = vmul.f32 1.0, %v885
    %v887 = vtanh.pop %v867
    %v888 = vmul.f32 %v886, %v769
    %890 = vrot.lane.b32.xlu0 %v887, 32
    %v891 = vpop.permute.xlu0 %890
    %v893 = vmul.f32 %v886, %v891
    %895 = vrot.lane.b32.xlu0 %v893, 32
    %v896 = vpop.permute.xlu0 %895
    %v898 = vadd.f32 %v888, %v896
    %v899 = vtanh.pop %v898
    %901 = vrot.lane.b32.xlu0 %v899, 32
    %v902 = vpop.permute.xlu0 %901
    %v904 = vmul.f32 %v886, %v902
    %906 = vrot.lane.b32.xlu0 %v904, 64
    %v907 = vpop.permute.xlu0 %906
    %910 = vrot.lane.b32.xlu0 %v844, 96
    %v911 = vpop.permute.xlu0 %910
    %v913 = vsel %vm201, %v907, %v911
    %v915 = vsel %vm268, %v913, 0
    %917 = vmatpush.msra.mxu0 0.0
    %918 = vmatpush.msra.mxu0 0.0
    %919 = vmatpush.msra.mxu0 0.0
    %920 = vmatpush.msra.mxu0 0.0
    %921 = vmatpush.msra.mxu0 0.0
    %922 = vmatpush.msra.mxu0 0.0
    %923 = vmatpush.msra.mxu0 0.0
    %924 = vmatpush.msra.mxu0 0.0
    %925 = vmatpush.msra.mxu0 %v117
    %926 = vmatpush.msra.mxu0 %v116
    %927 = vmatpush.msra.mxu0 %v115
    %928 = vmatpush.msra.mxu0 %v114
    %929 = vmatpush.msra.mxu0 %v113
    %930 = vmatpush.msra.mxu0 %v112
    %931 = vmatpush.msra.mxu0 %v111
    %932 = vmatpush.msra.mxu0 %v110
    %933 = vmatmul.f32.gmra.mxu0 %v915
    %v934 = vpop.f32.mrf.mxu0
    %v935 = vadd.f32 %v120, %v934
    %936 = vdwg.mxu0
    %v937 = vxor.u32 %v935, 2147483648
    %v938 = vmul.f32 %v937, 1.442695
    %v939 = vpow.pop %v938
    %v940 = vadd.f32 %v939, 1.0
    %v941 = vrcp.pop %v940
    %v942 = vmul.f32 %v940, %v941
    %v943 = vsub.f32 1.0, %v942
    %v944 = vmul.f32 %v941, %v943
    %v945 = vadd.f32 %v941, %v944
    %vm946 = vweird.f32 %v940
    %vm947 = vweird.f32 %v941
    %vm948 = vmor %vm946, %vm947
    %v949 = vsel %vm948, %v941, %v945
    %v950 = vand.u32 2147483647, %v940
    %vm951 = vcmp.eq.f32.partialorder %v950, 8.507059e+37
    %v952 = vand.u32 %v940, 2147483648
    %v953 = vor.u32 1.1754944e-38, %v952
    %v954 = vsel %vm951, %v953, %v949
    %v955 = vmul.f32 1.0, %v954
    %v956 = vtanh.pop %v935
    %v957 = vmul.f32 %v955, %v838
    %959 = vrot.lane.b32.xlu0 %v956, 32
    %v960 = vpop.permute.xlu0 %959
    %v962 = vmul.f32 %v955, %v960
    %964 = vrot.lane.b32.xlu0 %v962, 32
    %v965 = vpop.permute.xlu0 %964
    %v967 = vadd.f32 %v957, %v965
    %v968 = vtanh.pop %v967
    %970 = vrot.lane.b32.xlu0 %v968, 32
    %v971 = vpop.permute.xlu0 %970
    %v973 = vmul.f32 %v955, %v971
    %v974 = vsel %vm201, %v907, 0
    %976 = vmatpush.msra.mxu0 0.0
    %977 = vmatpush.msra.mxu0 0.0
    %978 = vmatpush.msra.mxu0 0.0
    %979 = vmatpush.msra.mxu0 0.0
    %980 = vmatpush.msra.mxu0 0.0
    %981 = vmatpush.msra.mxu0 0.0
    %982 = vmatpush.msra.mxu0 0.0
    %983 = vmatpush.msra.mxu0 0.0
    %984 = vmatpush.msra.mxu0 0.0
    %985 = vmatpush.msra.mxu0 0.0
    %986 = vmatpush.msra.mxu0 0.0
    %987 = vmatpush.msra.mxu0 0.0
    %988 = vmatpush.msra.mxu0 %v109
    %989 = vmatpush.msra.mxu0 %v108
    %990 = vmatpush.msra.mxu0 %v107
    %991 = vmatpush.msra.mxu0 %v106
    %992 = vmatmul.f32.gmra.mxu0 %v974
    %v993 = vpop.f32.mrf.mxu0
    %v994 = vadd.f32 0.0, %v993
    %995 = vdwg.mxu0
    %v996 = vadd.f32 %v196, %v994
    %v997 = vxor.u32 %v996, 2147483648
    %v998 = vmul.f32 %v997, 1.442695
    %v999 = vpow.pop %v998
    %v1000 = vadd.f32 %v999, 1.0
    %v1001 = vrcp.pop %v1000
    %v1002 = vmul.f32 %v1000, %v1001
    %v1003 = vsub.f32 1.0, %v1002
    %v1004 = vmul.f32 %v1001, %v1003
    %v1005 = vadd.f32 %v1001, %v1004
    %vm1006 = vweird.f32 %v1000
    %vm1007 = vweird.f32 %v1001
    %vm1008 = vmor %vm1006, %vm1007
    %v1009 = vsel %vm1008, %v1001, %v1005
    %v1010 = vand.u32 2147483647, %v1000
    %vm1011 = vcmp.eq.f32.partialorder %v1010, 8.507059e+37
    %v1012 = vand.u32 %v1000, 2147483648
    %v1013 = vor.u32 1.1754944e-38, %v1012
    %v1014 = vsel %vm1011, %v1013, %v1009
    %v1015 = vmul.f32 1.0, %v1014
    %v1016 = vtanh.pop %v996
    %v1017 = vmul.f32 %v1015, %v898
    %1019 = vrot.lane.b32.xlu0 %v1016, 32
    %v1020 = vpop.permute.xlu0 %1019
    %v1022 = vmul.f32 %v1015, %v1020
    %1024 = vrot.lane.b32.xlu0 %v1022, 32
    %v1025 = vpop.permute.xlu0 %1024
    %v1027 = vadd.f32 %v1017, %v1025
    %v1028 = vtanh.pop %v1027
    %1030 = vrot.lane.b32.xlu0 %v1028, 32
    %v1031 = vpop.permute.xlu0 %1030
    %v1033 = vmul.f32 %v1015, %v1031
    %1035 = vrot.lane.b32.xlu0 %v1033, 64
    %v1036 = vpop.permute.xlu0 %1035
    %1039 = vrot.lane.b32.xlu0 %v973, 96
    %v1040 = vpop.permute.xlu0 %1039
    %v1042 = vsel %vm201, %v1036, %v1040
    %v1044 = vsel %vm268, %v1042, 0
    %1046 = vmatpush.msra.mxu0 0.0
    %1047 = vmatpush.msra.mxu0 0.0
    %1048 = vmatpush.msra.mxu0 0.0
    %1049 = vmatpush.msra.mxu0 0.0
    %1050 = vmatpush.msra.mxu0 0.0
    %1051 = vmatpush.msra.mxu0 0.0
    %1052 = vmatpush.msra.mxu0 0.0
    %1053 = vmatpush.msra.mxu0 0.0
    %1054 = vmatpush.msra.mxu0 %v117
    %1055 = vmatpush.msra.mxu0 %v116
    %1056 = vmatpush.msra.mxu0 %v115
    %1057 = vmatpush.msra.mxu0 %v114
    %1058 = vmatpush.msra.mxu0 %v113
    %1059 = vmatpush.msra.mxu0 %v112
    %1060 = vmatpush.msra.mxu0 %v111
    %1061 = vmatpush.msra.mxu0 %v110
    %1062 = vmatmul.f32.gmra.mxu0 %v1044
    %v1063 = vpop.f32.mrf.mxu0
    %v1064 = vadd.f32 %v120, %v1063
    %1065 = vdwg.mxu0
    %v1066 = vxor.u32 %v1064, 2147483648
    %v1067 = vmul.f32 %v1066, 1.442695
    %v1068 = vpow.pop %v1067
    %v1069 = vadd.f32 %v1068, 1.0
    %v1070 = vrcp.pop %v1069
    %v1071 = vmul.f32 %v1069, %v1070
    %v1072 = vsub.f32 1.0, %v1071
    %v1073 = vmul.f32 %v1070, %v1072
    %v1074 = vadd.f32 %v1070, %v1073
    %vm1075 = vweird.f32 %v1069
    %vm1076 = vweird.f32 %v1070
    %vm1077 = vmor %vm1075, %vm1076
    %v1078 = vsel %vm1077, %v1070, %v1074
    %v1079 = vand.u32 2147483647, %v1069
    %vm1080 = vcmp.eq.f32.partialorder %v1079, 8.507059e+37
    %v1081 = vand.u32 %v1069, 2147483648
    %v1082 = vor.u32 1.1754944e-38, %v1081
    %v1083 = vsel %vm1080, %v1082, %v1078
    %v1084 = vmul.f32 1.0, %v1083
    %v1085 = vtanh.pop %v1064
    %v1086 = vmul.f32 %v1084, %v967
    %1088 = vrot.lane.b32.xlu0 %v1085, 32
    %v1089 = vpop.permute.xlu0 %1088
    %v1091 = vmul.f32 %v1084, %v1089
    %1093 = vrot.lane.b32.xlu0 %v1091, 32
    %v1094 = vpop.permute.xlu0 %1093
    %v1096 = vadd.f32 %v1086, %v1094
    %v1097 = vtanh.pop %v1096
    %1099 = vrot.lane.b32.xlu0 %v1097, 32
    %v1100 = vpop.permute.xlu0 %1099
    %v1102 = vmul.f32 %v1084, %v1100
    %v1103 = vsel %vm201, %v1036, 0
    %1105 = vmatpush.msra.mxu0 0.0
    %1106 = vmatpush.msra.mxu0 0.0
    %1107 = vmatpush.msra.mxu0 0.0
    %1108 = vmatpush.msra.mxu0 0.0
    %1109 = vmatpush.msra.mxu0 0.0
    %1110 = vmatpush.msra.mxu0 0.0
    %1111 = vmatpush.msra.mxu0 0.0
    %1112 = vmatpush.msra.mxu0 0.0
    %1113 = vmatpush.msra.mxu0 0.0
    %1114 = vmatpush.msra.mxu0 0.0
    %1115 = vmatpush.msra.mxu0 0.0
    %1116 = vmatpush.msra.mxu0 0.0
    %1117 = vmatpush.msra.mxu0 %v109
    %1118 = vmatpush.msra.mxu0 %v108
    %1119 = vmatpush.msra.mxu0 %v107
    %1120 = vmatpush.msra.mxu0 %v106
    %1121 = vmatmul.f32.gmra.mxu0 %v1103
    %v1122 = vpop.f32.mrf.mxu0
    %v1123 = vadd.f32 0.0, %v1122
    %1124 = vdwg.mxu0
    %v1125 = vadd.f32 %v199, %v1123
    %v1126 = vxor.u32 %v1125, 2147483648
    %v1127 = vmul.f32 %v1126, 1.442695
    %v1128 = vpow.pop %v1127
    %v1129 = vadd.f32 %v1128, 1.0
    %v1130 = vrcp.pop %v1129
    %v1131 = vmul.f32 %v1129, %v1130
    %v1132 = vsub.f32 1.0, %v1131
    %v1133 = vmul.f32 %v1130, %v1132
    %v1134 = vadd.f32 %v1130, %v1133
    %vm1135 = vweird.f32 %v1129
    %vm1136 = vweird.f32 %v1130
    %vm1137 = vmor %vm1135, %vm1136
    %v1138 = vsel %vm1137, %v1130, %v1134
    %v1139 = vand.u32 2147483647, %v1129
    %vm1140 = vcmp.eq.f32.partialorder %v1139, 8.507059e+37
    %v1141 = vand.u32 %v1129, 2147483648
    %v1142 = vor.u32 1.1754944e-38, %v1141
    %v1143 = vsel %vm1140, %v1142, %v1138
    %v1144 = vmul.f32 1.0, %v1143
    %v1145 = vtanh.pop %v1125
    %v1146 = vmul.f32 %v1144, %v1027
    %1148 = vrot.lane.b32.xlu0 %v1145, 32
    %v1149 = vpop.permute.xlu0 %1148
    %v1151 = vmul.f32 %v1144, %v1149
    %1153 = vrot.lane.b32.xlu0 %v1151, 32
    %v1154 = vpop.permute.xlu0 %1153
    %v1156 = vadd.f32 %v1146, %v1154
    %v1157 = vtanh.pop %v1156
    %1159 = vrot.lane.b32.xlu0 %v1157, 32
    %v1160 = vpop.permute.xlu0 %1159
    %v1162 = vmul.f32 %v1144, %v1160
    %1164 = vrot.lane.b32.xlu0 %v1162, 64
    %v1165 = vpop.permute.xlu0 %1164
    %1168 = vrot.lane.b32.xlu0 %v1102, 96
    %v1169 = vpop.permute.xlu0 %1168
    %v1171 = vsel %vm201, %v1165, %v1169
    %v1173 = vsel %vm268, %v1171, 0
    %1175 = vmatpush.msra.mxu0 0.0
    %1176 = vmatpush.msra.mxu0 0.0
    %1177 = vmatpush.msra.mxu0 0.0
    %1178 = vmatpush.msra.mxu0 0.0
    %1179 = vmatpush.msra.mxu0 0.0
    %1180 = vmatpush.msra.mxu0 0.0
    %1181 = vmatpush.msra.mxu0 0.0
    %1182 = vmatpush.msra.mxu0 0.0
    %1183 = vmatpush.msra.mxu0 %v117
    %1184 = vmatpush.msra.mxu0 %v116
    %1185 = vmatpush.msra.mxu0 %v115
    %1186 = vmatpush.msra.mxu0 %v114
    %1187 = vmatpush.msra.mxu0 %v113
    %1188 = vmatpush.msra.mxu0 %v112
    %1189 = vmatpush.msra.mxu0 %v111
    %1190 = vmatpush.msra.mxu0 %v110
    %1191 = vmatmul.f32.gmra.mxu0 %v1173
    %v1192 = vpop.f32.mrf.mxu0
    %v1193 = vadd.f32 %v120, %v1192
    %1194 = vdwg.mxu0
    %v1195 = vxor.u32 %v1193, 2147483648
    %v1196 = vmul.f32 %v1195, 1.442695
    %v1197 = vpow.pop %v1196
    %v1198 = vadd.f32 %v1197, 1.0
    %v1199 = vrcp.pop %v1198
    %v1200 = vmul.f32 %v1198, %v1199
    %v1201 = vsub.f32 1.0, %v1200
    %v1202 = vmul.f32 %v1199, %v1201
    %v1203 = vadd.f32 %v1199, %v1202
    %vm1204 = vweird.f32 %v1198
    %vm1205 = vweird.f32 %v1199
    %vm1206 = vmor %vm1204, %vm1205
    %v1207 = vsel %vm1206, %v1199, %v1203
    %v1208 = vand.u32 2147483647, %v1198
    %vm1209 = vcmp.eq.f32.partialorder %v1208, 8.507059e+37
    %v1210 = vand.u32 %v1198, 2147483648
    %v1211 = vor.u32 1.1754944e-38, %v1210
    %v1212 = vsel %vm1209, %v1211, %v1207
    %v1213 = vmul.f32 1.0, %v1212
    %v1214 = vtanh.pop %v1193
    %v1215 = vmul.f32 %v1213, %v1096
    %1217 = vrot.lane.b32.xlu0 %v1214, 32
    %v1218 = vpop.permute.xlu0 %1217
    %v1220 = vmul.f32 %v1213, %v1218
    %1222 = vrot.lane.b32.xlu0 %v1220, 32
    %v1223 = vpop.permute.xlu0 %1222
    %v1225 = vadd.f32 %v1215, %v1223
    %v1226 = vtanh.pop %v1225
    %1228 = vrot.lane.b32.xlu0 %v1226, 32
    %v1229 = vpop.permute.xlu0 %1228
    %v1231 = vmul.f32 %v1213, %v1229
    %v1232 = vld [vmem:[#allocation10] sm:$0xff]
    %v1233 = vld [vmem:[#allocation10 + $0x8] sm:$0xff]
    %v1234 = vld [vmem:[#allocation10 + $0x10] sm:$0xff]
    %v1235 = vld [vmem:[#allocation10 + $0x18] sm:$0xff]
    %v1236 = vld [vmem:[%s7] sm:$0x1]
    %v1238 = vperm.slane %v1236, 0
    %1241 = vrot.lane.b32.xlu0 %v1231, 64
    %v1242 = vpop.permute.xlu0 %1241
    %v1243 = vsel %vm201, %v1242, 0
    %1245 = vmatpush.msra.mxu0 0.0
    %1246 = vmatpush.msra.mxu0 0.0
    %1247 = vmatpush.msra.mxu0 0.0
    %1248 = vmatpush.msra.mxu0 0.0
    %1249 = vmatpush.msra.mxu0 0.0
    %1250 = vmatpush.msra.mxu0 0.0
    %1251 = vmatpush.msra.mxu0 0.0
    %1252 = vmatpush.msra.mxu0 0.0
    %1253 = vmatpush.msra.mxu0 0.0
    %1254 = vmatpush.msra.mxu0 0.0
    %1255 = vmatpush.msra.mxu0 0.0
    %1256 = vmatpush.msra.mxu0 0.0
    %1257 = vmatpush.msra.mxu0 %v1235
    %1258 = vmatpush.msra.mxu0 %v1234
    %1259 = vmatpush.msra.mxu0 %v1233
    %1260 = vmatpush.msra.mxu0 %v1232
    %1261 = vmatmul.f32.gmra.mxu0 %v1243
    %v1262 = vpop.f32.mrf.mxu0
    %v1263 = vadd.f32 %v1238, %v1262
    %1264 = vdwg.mxu0
    %1265 = vst [vmem:[#allocation11] sm:$0xff] %v1263
    // Predicated region
    $region54: #{tpu_custom_call.1} parent=1 // pred_check
      _
    $region55: #{tpu_custom_call.1} parent=1 // pred_check_branch
      %1267 = sbr.rel (0) target = $region57
    $region56: #{tpu_custom_call.1} parent=1 // pred_region
      %1269 = vsyncadd [#allocation4], 0
      %s1271 = sshll.u32 [#allocation11], 4
      %s1272 = int_to_ptr.vmem [resolvable:$true] %s1271
      %s1273 = sshll.u32 %s8, 4
      %s1274 = int_to_ptr.hbm [resolvable:$true] %s1273
      %1276 = dma.vmem_to_hbm [thread:$0]  %s1272, 128, %s1274, [#allocation4]
    $region57: #{tpu_custom_call.1} parent=1 // pred_fallthru
      _
    // Predicated region
    $region58: #{tpu_custom_call.1} parent=1 // pred_check
      _
    $region59: #{tpu_custom_call.1} parent=1 // pred_check_branch
      %1278 = sbr.rel (0) target = $region61
    $region60: #{tpu_custom_call.1} parent=1 // pred_region
      %1280 = dma.done [#allocation4], 128
    $region61: #{tpu_custom_call.1} parent=1 // pred_fallthru
      _
    %1281 = vsyncpa [#allocation3], 1
    %1282 = vsyncpa [#allocation6], 1
    %1283 = vsyncpa [#allocation9], 1
    %1284 = vsyncpa [#allocation4], 1

</llo_original>
